<compile_context>
chip_gen: v7x
topology: tpu7x:2x2x1
jax: 0.10.0
libtpu: 0.0.40
codegen_flags: <defaults>
</compile_context>

<pallas_src>
import functools

import jax
import jax.numpy as jnp
from jax.experimental import pallas as pl
from jax.experimental.pallas import tpu as pltpu


def _round_up(x, m):
    return ((x + m - 1) // m) * m


# ----------------------------- Pallas kernel ------------------------------- #

def _slot_attention_kernel(
    x_ref,      # (Bb, N, Dp)   bf16  (zero-padded lanes >= true D)
    s0_ref,     # (Bb, NS, Dp)  f32
    lnb_ref,    # (11, Dp)      f32: g_in,b_in,g_sl,b_sl,g_ff,b_ff,bq,bk,bv,b2,bhh_n
    gib_ref,    # (1, 3*Dp)     f32: [bih_r+bhh_r | bih_z+bhh_z | bih_n]
    b1_ref,     # (1, Hp)       f32
    wqkv_ref,   # (3, Dp, Dp)   bf16: wq, wk, wv
    wgru_ref,   # (2, Dp, 3*Dp) bf16: wih (r|z|n), whh (r|z|n)
    w1_ref,     # (Dp, Hp)      bf16
    w2_ref,     # (Hp, Dp)      bf16
    out_ref,    # (Bb, NS, Dp)  f32
    *, iters, eps, scale, ln_eps, true_d,
):
    f32, bf16 = jnp.float32, jnp.bfloat16
    Bb, N, Dp = x_ref.shape
    NS = s0_ref.shape[1]
    Hp = w1_ref.shape[1]
    rows_s = Bb * NS
    inv_d = 1.0 / true_d

    # ---- hoist all parameter loads once, above the iteration loop ----
    g_in, b_in = lnb_ref[0:1], lnb_ref[1:2]
    g_sl, b_sl = lnb_ref[2:3], lnb_ref[3:4]
    g_ff, b_ff = lnb_ref[4:5], lnb_ref[5:6]
    bq, bk, bv = lnb_ref[6:7], lnb_ref[7:8], lnb_ref[8:9]
    b2 = lnb_ref[9:10]
    bhh_n = lnb_ref[10:11]

    wq, wk, wv = wqkv_ref[0], wqkv_ref[1], wqkv_ref[2]
    wih, whh = wgru_ref[0], wgru_ref[1]
    w1, w2 = w1_ref[...], w2_ref[...]

    # Pre-broadcast per-iteration biases to the slot-row count (hoisted; JAX
    # does not CSE broadcast_in_dim inside the loop body).
    bq_b = jnp.broadcast_to(bq, (rows_s, Dp))
    bih_b = jnp.broadcast_to(gib_ref[...], (rows_s, 3 * Dp))
    bhh_n_b = jnp.broadcast_to(bhh_n, (rows_s, Dp))
    b1_b = jnp.broadcast_to(b1_ref[...], (rows_s, Hp))
    b2_b = jnp.broadcast_to(b2, (rows_s, Dp))

    def layernorm(t, g, b):
        # Lanes >= true_d are zero; compute stats over the true feature count
        # via E[x^2] - mu^2 so the padding never perturbs them.
        mu = jnp.sum(t, axis=-1, keepdims=True) * inv_d
        ms = jnp.sum(t * t, axis=-1, keepdims=True) * inv_d
        return (t - mu) * jax.lax.rsqrt(ms - mu * mu + ln_eps) * g + b

    def mm(a_bf16, w_bf16):
        # bf16 MXU operands, f32 accumulation.
        return jnp.dot(a_bf16, w_bf16, preferred_element_type=f32)

    # ---- input norm + k/v projection: batch folded into the sublane axis ----
    xf = x_ref[...].astype(f32).reshape(Bb * N, Dp)
    xn = layernorm(xf, g_in, b_in).astype(bf16)            # cast once, reused
    k = (mm(xn, wk) + bk).astype(bf16).reshape(Bb, N, Dp)
    v = (mm(xn, wv) + bv).astype(bf16).reshape(Bb, N, Dp)
    # NOTE: for large N, stream this projection + the attention pass below over
    # N chunks (pltpu.emit_pipeline) to stay inside v7x's 64 MiB VMEM.

    slots0 = s0_ref[...].reshape(rows_s, Dp)                # f32 carry

    def body(_, slots):
        slots_prev = slots

        sn = layernorm(slots, g_sl, b_sl).astype(bf16)
        q = (mm(sn, wq) + bq_b) * scale                     # fold 1/sqrt(D) into q
        qb = q.astype(bf16).reshape(Bb, NS, Dp)

        # dots[b, i, j] = q_i . k_j  -> (Bb, NS, N)
        dots = jnp.einsum("bid,bjd->bij", qb, k, preferred_element_type=f32)

        # softmax over the slot axis (axis=1), as in torch softmax(dim=1)
        m = jnp.max(dots, axis=1, keepdims=True)
        e = jnp.exp(dots - m)
        attn = e * pl.reciprocal(jnp.sum(e, axis=1, keepdims=True), approx=True)
        attn = attn + eps
        # exact divide for the per-slot token renormalization (PyTorch parity)
        attn = attn / jnp.sum(attn, axis=-1, keepdims=True)

        updates = jnp.einsum("bij,bjd->bid", attn.astype(bf16), v,
                             preferred_element_type=f32)
        ub = updates.reshape(rows_s, Dp).astype(bf16)       # cast once
        hb = slots_prev.astype(bf16)                        # cast once

        # ---- GRUCell(updates, slots_prev): one wide MXU matmul per side ----
        gi = mm(ub, wih) + bih_b                            # (rows, 3*Dp)
        gh = mm(hb, whh)                                    # r,z biases folded into gi
        r = jax.nn.sigmoid(gi[:, 0:Dp] + gh[:, 0:Dp])
        z = jax.nn.sigmoid(gi[:, Dp:2 * Dp] + gh[:, Dp:2 * Dp])
        n_gate = jnp.tanh(gi[:, 2 * Dp:] + r * (gh[:, 2 * Dp:] + bhh_n_b))
        slots_new = (1.0 - z) * n_gate + z * slots_prev

        # ---- residual MLP ----
        sp = layernorm(slots_new, g_ff, b_ff).astype(bf16)
        h = jnp.maximum(mm(sp, w1) + b1_b, 0.0).astype(bf16)
        return slots_new + mm(h, w2) + b2_b

    slots = jax.lax.fori_loop(0, iters, body, slots0)
    out_ref[...] = slots.reshape(Bb, NS, Dp).astype(out_ref.dtype)


# ------------------------------- wrapper ------------------------------------ #

def slot_attention_forward(x, slots0, params, *, iters=7, eps=1e-8):
    """x: (B, N, D) f32, slots0: (B, NS, D) f32 -> (B, NS, D) f32."""
    B, N, D = x.shape
    _, NS, _ = slots0.shape
    scale = float(D) ** (-0.5)
    f32, bf16 = jnp.float32, jnp.bfloat16

    H = params["w1"].shape[1]
    Dp = _round_up(D, 128)       # lane-dense feature dim
    Hp = _round_up(H, 128)

    # ---- explicit VMEM limit (~75% of physical; 64 MiB fallback) ----
    try:
        vmem_cap = int(pltpu.get_tpu_info().vmem_capacity_bytes)
    except Exception:
        vmem_cap = 64 * 1024 * 1024
    vmem_limit = min(int(vmem_cap * 0.75), 100 * 1024 * 1024)

    # ---- choose Bb: batch elements folded into the sublane axis per step ----
    # Target >=128 rows on the slot-side matmuls and >=256 on the token side,
    # bounded by a per-step VMEM budget; B is padded to a multiple of Bb; keep
    # at least 2 grid steps so "parallel" can shard across v7x's two TCs.
    bb_rows = max(pl.cdiv(128, NS), pl.cdiv(256, N))
    per_bb = (2 * N * Dp * 2                 # x block (bf16), double-buffered
              + 2 * 2 * NS * Dp * 4          # slots0 + out blocks (f32), 2 bufs
              + N * Dp * (4 + 2)             # xn f32 + bf16
              + 2 * N * Dp * 2               # resident k, v (bf16)
              + 4 * NS * N * 4               # dots / softmax temps (f32)
              + 2 * NS * 3 * Dp * 4          # GRU gate activations (f32)
              + 2 * NS * Hp * 4)             # MLP hidden (f32)
    bb_vmem = max(1, (vmem_limit // 2) // per_bb)
    Bb = max(1, min(B, bb_rows, bb_vmem))
    if B >= 2:
        Bb = min(Bb, pl.cdiv(B, 2))          # guarantee >= 2 parallel grid steps
    B_pad = _round_up(B, Bb)
    grid = (B_pad // Bb,)

    # ---- zero-pad activations to (B_pad, ., Dp); x travels as bf16 ----
    x_p = jnp.zeros((B_pad, N, Dp), bf16).at[:B, :, :D].set(x.astype(bf16))
    s0_p = jnp.zeros((B_pad, NS, Dp), f32).at[:B, :, :D].set(slots0.astype(f32))

    # ---- consolidate + lane-pad parameters ----
    def pad2(a, rows, cols, dtype):
        return jnp.zeros((rows, cols), dtype).at[:a.shape[0], :a.shape[1]].set(
            a.astype(dtype))

    lnb = jnp.concatenate([
        pad2(params["g_in"], 1, Dp, f32), pad2(params["b_in"], 1, Dp, f32),
        pad2(params["g_sl"], 1, Dp, f32), pad2(params["b_sl"], 1, Dp, f32),
        pad2(params["g_ff"], 1, Dp, f32), pad2(params["b_ff"], 1, Dp, f32),
        pad2(params["bq"], 1, Dp, f32), pad2(params["bk"], 1, Dp, f32),
        pad2(params["bv"], 1, Dp, f32), pad2(params["b2"], 1, Dp, f32),
        pad2(params["bhh_n"], 1, Dp, f32),
    ], axis=0)                                                     # (11, Dp)

    gib = jnp.concatenate([
        pad2(params["bih_r"] + params["bhh_r"], 1, Dp, f32),
        pad2(params["bih_z"] + params["bhh_z"], 1, Dp, f32),
        pad2(params["bih_n"], 1, Dp, f32),
    ], axis=1)                                                     # (1, 3*Dp)

    b1 = pad2(params["b1"], 1, Hp, f32)                            # (1, Hp)

    wqkv = jnp.stack([pad2(params["wq"], Dp, Dp, bf16),
                      pad2(params["wk"], Dp, Dp, bf16),
                      pad2(params["wv"], Dp, Dp, bf16)], axis=0)   # (3, Dp, Dp)

    wih = jnp.concatenate([pad2(params["wih_r"], Dp, Dp, bf16),
                           pad2(params["wih_z"], Dp, Dp, bf16),
                           pad2(params["wih_n"], Dp, Dp, bf16)], axis=1)
    whh = jnp.concatenate([pad2(params["whh_r"], Dp, Dp, bf16),
                           pad2(params["whh_z"], Dp, Dp, bf16),
                           pad2(params["whh_n"], Dp, Dp, bf16)], axis=1)
    wgru = jnp.stack([wih, whh], axis=0)                           # (2, Dp, 3*Dp)

    w1 = pad2(params["w1"], Dp, Hp, bf16)                          # (Dp, Hp)
    w2 = pad2(params["w2"], Hp, Dp, bf16)                          # (Hp, Dp)

    const_args = [lnb, gib, b1, wqkv, wgru, w1, w2]

    def const_spec(a):
        # NOTE: when VMEM-tight (v7x, big Bb*N), these never-changing blocks can
        # be single-buffered via pipeline_mode=pl.Buffered(1); they are tiny here.
        nd = a.ndim
        return pl.BlockSpec(a.shape, lambda b, nd=nd: (0,) * nd)

    in_specs = [
        pl.BlockSpec((Bb, N, Dp), lambda b: (b, 0, 0)),
        pl.BlockSpec((Bb, NS, Dp), lambda b: (b, 0, 0)),
    ] + [const_spec(a) for a in const_args]

    kernel = functools.partial(
        _slot_attention_kernel,
        iters=iters, eps=eps, scale=scale, ln_eps=1e-5, true_d=D)

    out_p = pl.pallas_call(
        kernel,
        out_shape=jax.ShapeDtypeStruct((B_pad, NS, Dp), f32),
        grid=grid,
        in_specs=in_specs,
        out_specs=pl.BlockSpec((Bb, NS, Dp), lambda b: (b, 0, 0)),
        compiler_params=pltpu.CompilerParams(
            dimension_semantics=("parallel",),
            vmem_limit_bytes=vmem_limit),
    )(x_p, s0_p, *const_args)

    return out_p[:B, :, :D]


# --------------------------- pure-JAX reference ------------------------------ #

def slot_attention_ref(x, slots0, P, *, iters=7, eps=1e-8):
    """f32 reference matching the original (concatenated-GRU) torch formulation."""
    B, N, D = x.shape
    scale = float(D) ** (-0.5)

    def ln(t, g, b):
        mu = jnp.mean(t, axis=-1, keepdims=True)
        var = jnp.mean((t - mu) ** 2, axis=-1, keepdims=True)
        return (t - mu) * jax.lax.rsqrt(var + 1e-5) * g + b

    wih = jnp.concatenate([P["wih_r"], P["wih_z"], P["wih_n"]], axis=1)
    bih = jnp.concatenate([P["bih_r"], P["bih_z"], P["bih_n"]], axis=1)
    whh = jnp.concatenate([P["whh_r"], P["whh_z"], P["whh_n"]], axis=1)
    bhh = jnp.concatenate([P["bhh_r"], P["bhh_z"], P["bhh_n"]], axis=1)

    xn = ln(x, P["g_in"], P["b_in"])
    k = xn @ P["wk"] + P["bk"]
    v = xn @ P["wv"] + P["bv"]
    slots = slots0
    for _ in range(iters):
        slots_prev = slots
        q = ln(slots, P["g_sl"], P["b_sl"]) @ P["wq"] + P["bq"]
        dots = jnp.einsum("bid,bjd->bij", q, k) * scale
        attn = jax.nn.softmax(dots, axis=1) + eps
        attn = attn / jnp.sum(attn, axis=-1, keepdims=True)
        updates = jnp.einsum("bjd,bij->bid", v, attn)
        gi = updates @ wih + bih
        gh = slots_prev @ whh + bhh
        r = jax.nn.sigmoid(gi[..., 0:D] + gh[..., 0:D])
        z = jax.nn.sigmoid(gi[..., D:2 * D] + gh[..., D:2 * D])
        ng = jnp.tanh(gi[..., 2 * D:3 * D] + r * gh[..., 2 * D:3 * D])
        slots = (1.0 - z) * ng + z * slots_prev
        h = jnp.maximum(ln(slots, P["g_ff"], P["b_ff"]) @ P["w1"] + P["b1"], 0.0)
        slots = slots + h @ P["w2"] + P["b2"]
    return slots


# --------------------------------- main ------------------------------------- #

if __name__ == "__main__":
    B, N, D = 2, 16, 32          # batch, tokens, feature dim
    NUM_SLOTS = 4
    ITERS = 7
    HIDDEN = max(D, 128)         # matches nn module: hidden_dim = max(dim, 128)

    key = jax.random.PRNGKey(0)
    keys = jax.random.split(key, 32)

    def rnd(k, shape, s=0.1):
        return (s * jax.random.normal(k, shape)).astype(jnp.float32)

    # ---- deterministic parameter init (shapes equivalent to the torch module) ----
    slots_mu = jax.random.normal(keys[0], (1, 1, D)).astype(jnp.float32)
    slots_sigma = jnp.abs(jax.random.normal(keys[1], (1, 1, D))).astype(jnp.float32)

    params = {
        # LayerNorms (gamma, beta) stored as (1, D)
        "g_in": 1.0 + rnd(keys[2], (1, D)), "b_in": rnd(keys[3], (1, D)),
        "g_sl": 1.0 + rnd(keys[4], (1, D)), "b_sl": rnd(keys[5], (1, D)),
        "g_ff": 1.0 + rnd(keys[6], (1, D)), "b_ff": rnd(keys[7], (1, D)),
        # Linear layers, (in, out) so kernel does x @ W
        "wq": rnd(keys[8], (D, D)), "bq": rnd(keys[9], (1, D)),
        "wk": rnd(keys[10], (D, D)), "bk": rnd(keys[11], (1, D)),
        "wv": rnd(keys[12], (D, D)), "bv": rnd(keys[13], (1, D)),
        # GRUCell split per-gate (order r, z, n) — equivalent to torch's (3D, D)
        # weight_ih / weight_hh split along the gate axis and transposed.
        "wih_r": rnd(keys[14], (D, D)), "bih_r": rnd(keys[15], (1, D)),
        "wih_z": rnd(keys[16], (D, D)), "bih_z": rnd(keys[17], (1, D)),
        "wih_n": rnd(keys[18], (D, D)), "bih_n": rnd(keys[19], (1, D)),
        "whh_r": rnd(keys[20], (D, D)), "bhh_r": rnd(keys[21], (1, D)),
        "whh_z": rnd(keys[22], (D, D)), "bhh_z": rnd(keys[23], (1, D)),
        "whh_n": rnd(keys[24], (D, D)), "bhh_n": rnd(keys[25], (1, D)),
        # MLP: Linear(D, HIDDEN) -> ReLU -> Linear(HIDDEN, D)
        "w1": rnd(keys[26], (D, HIDDEN)), "b1": rnd(keys[27], (1, HIDDEN)),
        "w2": rnd(keys[28], (HIDDEN, D)), "b2": rnd(keys[29], (1, D)),
    }

    # ---- inputs and slot initialization (slots ~ Normal(mu, sigma)) ----
    # TODO(synk): slot sampling (torch.normal) is done in plain JAX outside the kernel.
    x = jax.random.normal(keys[30], (B, N, D)).astype(jnp.float32)
    noise = jax.random.normal(keys[31], (B, NUM_SLOTS, D)).astype(jnp.float32)
    slots0 = (slots_mu + slots_sigma * noise).astype(jnp.float32)

    out = slot_attention_forward(x, slots0, params, iters=ITERS, eps=1e-8)
    out = jax.block_until_ready(out)

    ref = slot_attention_ref(x, slots0, params, iters=ITERS, eps=1e-8)
    ref = jax.block_until_ready(ref)

    assert out.shape == (B, NUM_SLOTS, D)
    assert bool(jnp.all(jnp.isfinite(out)))
    # bf16 x + bf16 MXU operands (f32 accumulation) over 7 recurrent iterations
    # vs. a pure-f32 reference; structural bugs produce O(1) errors, far above this.
    assert bool(jnp.allclose(out, ref, rtol=8e-2, atol=8e-2))

    print("KERNEL_OK")
</pallas_src>

<mosaic_0001>
module attributes {stable_mosaic.version = 11 : i64} {
  func.func @_slot_attention_kernel(%arg0: i32, %arg1: memref<1x16x128xbf16, #tpu.memory_space<vmem>>, %arg2: memref<1x4x128xf32, #tpu.memory_space<vmem>>, %arg3: memref<11x128xf32, #tpu.memory_space<vmem>>, %arg4: memref<1x384xf32, #tpu.memory_space<vmem>>, %arg5: memref<1x128xf32, #tpu.memory_space<vmem>>, %arg6: memref<3x128x128xbf16, #tpu.memory_space<vmem>>, %arg7: memref<2x128x384xbf16, #tpu.memory_space<vmem>>, %arg8: memref<128x128xbf16, #tpu.memory_space<vmem>>, %arg9: memref<128x128xbf16, #tpu.memory_space<vmem>>, %arg10: memref<1x4x128xf32, #tpu.memory_space<vmem>>) attributes {dimension_semantics = [#tpu.dimension_semantics<parallel>], iteration_bounds = array<i64: 2>, scalar_prefetch = 0 : i64, scratch_operands = 0 : i64, tpu.core_type = #tpu.core_type<tc>, window_params = [{transform_indices = @transform_0, window_bounds = array<i64: 1, 16, 128>}, {transform_indices = @transform_1, window_bounds = array<i64: 1, 4, 128>}, {pipeline_mode = #tpu.pipeline_mode<synchronous>, transform_indices = @transform_2, window_bounds = array<i64: 11, 128>}, {pipeline_mode = #tpu.pipeline_mode<synchronous>, transform_indices = @transform_3, window_bounds = array<i64: 1, 384>}, {pipeline_mode = #tpu.pipeline_mode<synchronous>, transform_indices = @transform_4, window_bounds = array<i64: 1, 128>}, {pipeline_mode = #tpu.pipeline_mode<synchronous>, transform_indices = @transform_5, window_bounds = array<i64: 3, 128, 128>}, {pipeline_mode = #tpu.pipeline_mode<synchronous>, transform_indices = @transform_6, window_bounds = array<i64: 2, 128, 384>}, {pipeline_mode = #tpu.pipeline_mode<synchronous>, transform_indices = @transform_7, window_bounds = array<i64: 128, 128>}, {pipeline_mode = #tpu.pipeline_mode<synchronous>, transform_indices = @transform_8, window_bounds = array<i64: 128, 128>}, {transform_indices = @transform_9, window_bounds = array<i64: 1, 4, 128>}]} {
    %c0 = arith.constant 0 : index
    %c0_0 = arith.constant 0 : index
    %0 = vector.load %arg3[%c0, %c0_0] : memref<11x128xf32, #tpu.memory_space<vmem>>, vector<1x128xf32>
    %c1 = arith.constant 1 : index
    %c0_1 = arith.constant 0 : index
    %1 = vector.load %arg3[%c1, %c0_1] : memref<11x128xf32, #tpu.memory_space<vmem>>, vector<1x128xf32>
    %c2 = arith.constant 2 : index
    %c0_2 = arith.constant 0 : index
    %2 = vector.load %arg3[%c2, %c0_2] : memref<11x128xf32, #tpu.memory_space<vmem>>, vector<1x128xf32>
    %c3 = arith.constant 3 : index
    %c0_3 = arith.constant 0 : index
    %3 = vector.load %arg3[%c3, %c0_3] : memref<11x128xf32, #tpu.memory_space<vmem>>, vector<1x128xf32>
    %c4 = arith.constant 4 : index
    %c0_4 = arith.constant 0 : index
    %4 = vector.load %arg3[%c4, %c0_4] : memref<11x128xf32, #tpu.memory_space<vmem>>, vector<1x128xf32>
    %c5 = arith.constant 5 : index
    %c0_5 = arith.constant 0 : index
    %5 = vector.load %arg3[%c5, %c0_5] : memref<11x128xf32, #tpu.memory_space<vmem>>, vector<1x128xf32>
    %c6 = arith.constant 6 : index
    %c0_6 = arith.constant 0 : index
    %6 = vector.load %arg3[%c6, %c0_6] : memref<11x128xf32, #tpu.memory_space<vmem>>, vector<1x128xf32>
    %c7 = arith.constant 7 : index
    %c0_7 = arith.constant 0 : index
    %7 = vector.load %arg3[%c7, %c0_7] : memref<11x128xf32, #tpu.memory_space<vmem>>, vector<1x128xf32>
    %c8 = arith.constant 8 : index
    %c0_8 = arith.constant 0 : index
    %8 = vector.load %arg3[%c8, %c0_8] : memref<11x128xf32, #tpu.memory_space<vmem>>, vector<1x128xf32>
    %c9 = arith.constant 9 : index
    %c0_9 = arith.constant 0 : index
    %9 = vector.load %arg3[%c9, %c0_9] : memref<11x128xf32, #tpu.memory_space<vmem>>, vector<1x128xf32>
    %c10 = arith.constant 10 : index
    %c0_10 = arith.constant 0 : index
    %10 = vector.load %arg3[%c10, %c0_10] : memref<11x128xf32, #tpu.memory_space<vmem>>, vector<1x128xf32>
    %c0_11 = arith.constant 0 : index
    %c0_12 = arith.constant 0 : index
    %c0_13 = arith.constant 0 : index
    %11 = vector.load %arg6[%c0_11, %c0_12, %c0_13] : memref<3x128x128xbf16, #tpu.memory_space<vmem>>, vector<1x128x128xbf16>
    %12 = vector.shape_cast %11 : vector<1x128x128xbf16> to vector<128x128xbf16>
    %c1_14 = arith.constant 1 : index
    %c0_15 = arith.constant 0 : index
    %c0_16 = arith.constant 0 : index
    %13 = vector.load %arg6[%c1_14, %c0_15, %c0_16] : memref<3x128x128xbf16, #tpu.memory_space<vmem>>, vector<1x128x128xbf16>
    %14 = vector.shape_cast %13 : vector<1x128x128xbf16> to vector<128x128xbf16>
    %c2_17 = arith.constant 2 : index
    %c0_18 = arith.constant 0 : index
    %c0_19 = arith.constant 0 : index
    %15 = vector.load %arg6[%c2_17, %c0_18, %c0_19] : memref<3x128x128xbf16, #tpu.memory_space<vmem>>, vector<1x128x128xbf16>
    %16 = vector.shape_cast %15 : vector<1x128x128xbf16> to vector<128x128xbf16>
    %c0_20 = arith.constant 0 : index
    %c0_21 = arith.constant 0 : index
    %c0_22 = arith.constant 0 : index
    %17 = vector.load %arg7[%c0_20, %c0_21, %c0_22] : memref<2x128x384xbf16, #tpu.memory_space<vmem>>, vector<1x128x384xbf16>
    %18 = vector.shape_cast %17 : vector<1x128x384xbf16> to vector<128x384xbf16>
    %c1_23 = arith.constant 1 : index
    %c0_24 = arith.constant 0 : index
    %c0_25 = arith.constant 0 : index
    %19 = vector.load %arg7[%c1_23, %c0_24, %c0_25] : memref<2x128x384xbf16, #tpu.memory_space<vmem>>, vector<1x128x384xbf16>
    %20 = vector.shape_cast %19 : vector<1x128x384xbf16> to vector<128x384xbf16>
    %c0_26 = arith.constant 0 : index
    %c0_27 = arith.constant 0 : index
    %21 = vector.load %arg8[%c0_26, %c0_27] : memref<128x128xbf16, #tpu.memory_space<vmem>>, vector<128x128xbf16>
    %c0_28 = arith.constant 0 : index
    %c0_29 = arith.constant 0 : index
    %22 = vector.load %arg9[%c0_28, %c0_29] : memref<128x128xbf16, #tpu.memory_space<vmem>>, vector<128x128xbf16>
    %23 = vector.shape_cast %6 : vector<1x128xf32> to vector<1x128xf32>
    %24 = vector.broadcast %23 : vector<1x128xf32> to vector<4x128xf32>
    %c0_30 = arith.constant 0 : index
    %c0_31 = arith.constant 0 : index
    %25 = vector.load %arg4[%c0_30, %c0_31] : memref<1x384xf32, #tpu.memory_space<vmem>>, vector<1x384xf32>
    %26 = vector.shape_cast %25 : vector<1x384xf32> to vector<1x384xf32>
    %27 = vector.broadcast %26 : vector<1x384xf32> to vector<4x384xf32>
    %28 = vector.shape_cast %10 : vector<1x128xf32> to vector<1x128xf32>
    %29 = vector.broadcast %28 : vector<1x128xf32> to vector<4x128xf32>
    %c0_32 = arith.constant 0 : index
    %c0_33 = arith.constant 0 : index
    %30 = vector.load %arg5[%c0_32, %c0_33] : memref<1x128xf32, #tpu.memory_space<vmem>>, vector<1x128xf32>
    %31 = vector.shape_cast %30 : vector<1x128xf32> to vector<1x128xf32>
    %32 = vector.broadcast %31 : vector<1x128xf32> to vector<4x128xf32>
    %33 = vector.shape_cast %9 : vector<1x128xf32> to vector<1x128xf32>
    %34 = vector.broadcast %33 : vector<1x128xf32> to vector<4x128xf32>
    %c0_34 = arith.constant 0 : index
    %c0_35 = arith.constant 0 : index
    %c0_36 = arith.constant 0 : index
    %35 = vector.load %arg1[%c0_34, %c0_35, %c0_36] : memref<1x16x128xbf16, #tpu.memory_space<vmem>>, vector<1x16x128xbf16>
    %36 = arith.extf %35 : vector<1x16x128xbf16> to vector<1x16x128xf32>
    %37 = vector.shape_cast %36 : vector<1x16x128xf32> to vector<16x128xf32>
    %cst = arith.constant dense<0.000000e+00> : vector<16xf32>
    %38 = vector.multi_reduction <add>, %37, %cst [1] : vector<16x128xf32> to vector<16xf32>
    %39 = vector.shape_cast %38 : vector<16xf32> to vector<16x1xf32>
    %cst_37 = arith.constant 3.125000e-02 : f32
    %40 = vector.broadcast %cst_37 : f32 to vector<16x1xf32>
    %41 = arith.mulf %39, %40 : vector<16x1xf32>
    %42 = arith.mulf %37, %37 : vector<16x128xf32>
    %cst_38 = arith.constant dense<0.000000e+00> : vector<16xf32>
    %43 = vector.multi_reduction <add>, %42, %cst_38 [1] : vector<16x128xf32> to vector<16xf32>
    %44 = vector.shape_cast %43 : vector<16xf32> to vector<16x1xf32>
    %cst_39 = arith.constant 3.125000e-02 : f32
    %45 = vector.broadcast %cst_39 : f32 to vector<16x1xf32>
    %46 = arith.mulf %44, %45 : vector<16x1xf32>
    %47 = vector.broadcast %41 : vector<16x1xf32> to vector<16x128xf32>
    %48 = arith.subf %37, %47 : vector<16x128xf32>
    %49 = arith.mulf %41, %41 : vector<16x1xf32>
    %50 = arith.subf %46, %49 : vector<16x1xf32>
    %cst_40 = arith.constant 9.99999974E-6 : f32
    %51 = vector.broadcast %cst_40 : f32 to vector<16x1xf32>
    %52 = arith.addf %50, %51 : vector<16x1xf32>
    %53 = math.rsqrt %52 : vector<16x1xf32>
    %54 = vector.broadcast %53 : vector<16x1xf32> to vector<16x128xf32>
    %55 = arith.mulf %48, %54 : vector<16x128xf32>
    %56 = vector.broadcast %0 : vector<1x128xf32> to vector<16x128xf32>
    %57 = arith.mulf %55, %56 : vector<16x128xf32>
    %58 = vector.broadcast %1 : vector<1x128xf32> to vector<16x128xf32>
    %59 = arith.addf %57, %58 : vector<16x128xf32>
    %60 = arith.truncf %59 : vector<16x128xf32> to vector<16x128xbf16>
    %cst_41 = arith.constant dense<0.000000e+00> : vector<16x128xf32>
    %61 = tpu.matmul %60, %14, %cst_41 {dimension_numbers = #tpu.dot_dimension_numbers<[1], [0], [0], [1], [0, 0, 1, 1], [], []>} : vector<16x128xbf16>, vector<128x128xbf16>, vector<16x128xf32> -> vector<16x128xf32>
    %62 = vector.broadcast %7 : vector<1x128xf32> to vector<16x128xf32>
    %63 = arith.addf %61, %62 : vector<16x128xf32>
    %64 = arith.truncf %63 : vector<16x128xf32> to vector<16x128xbf16>
    %65 = vector.shape_cast %64 : vector<16x128xbf16> to vector<1x16x128xbf16>
    %cst_42 = arith.constant dense<0.000000e+00> : vector<16x128xf32>
    %66 = tpu.matmul %60, %16, %cst_42 {dimension_numbers = #tpu.dot_dimension_numbers<[1], [0], [0], [1], [0, 0, 1, 1], [], []>} : vector<16x128xbf16>, vector<128x128xbf16>, vector<16x128xf32> -> vector<16x128xf32>
    %67 = vector.broadcast %8 : vector<1x128xf32> to vector<16x128xf32>
    %68 = arith.addf %66, %67 : vector<16x128xf32>
    %69 = arith.truncf %68 : vector<16x128xf32> to vector<16x128xbf16>
    %70 = vector.shape_cast %69 : vector<16x128xbf16> to vector<1x16x128xbf16>
    %c0_43 = arith.constant 0 : index
    %c0_44 = arith.constant 0 : index
    %c0_45 = arith.constant 0 : index
    %71 = vector.load %arg2[%c0_43, %c0_44, %c0_45] : memref<1x4x128xf32, #tpu.memory_space<vmem>>, vector<1x4x128xf32>
    %72 = vector.shape_cast %71 : vector<1x4x128xf32> to vector<4x128xf32>
    %c0_i32 = arith.constant 0 : i32
    %c7_i32 = arith.constant 7 : i32
    %73 = arith.addi %c0_i32, %c7_i32 : i32
    %c1_i32 = arith.constant 1 : i32
    %74 = scf.for %arg11 = %c0_i32 to %73 step %c1_i32 iter_args(%arg12 = %72) -> (vector<4x128xf32>)  : i32 {
      %cst_49 = arith.constant dense<0.000000e+00> : vector<4xf32>
      %77 = vector.multi_reduction <add>, %arg12, %cst_49 [1] : vector<4x128xf32> to vector<4xf32>
      %78 = vector.shape_cast %77 : vector<4xf32> to vector<4x1xf32>
      %cst_50 = arith.constant 3.125000e-02 : f32
      %79 = vector.broadcast %cst_50 : f32 to vector<4x1xf32>
      %80 = arith.mulf %78, %79 : vector<4x1xf32>
      %81 = arith.mulf %arg12, %arg12 : vector<4x128xf32>
      %cst_51 = arith.constant dense<0.000000e+00> : vector<4xf32>
      %82 = vector.multi_reduction <add>, %81, %cst_51 [1] : vector<4x128xf32> to vector<4xf32>
      %83 = vector.shape_cast %82 : vector<4xf32> to vector<4x1xf32>
      %cst_52 = arith.constant 3.125000e-02 : f32
      %84 = vector.broadcast %cst_52 : f32 to vector<4x1xf32>
      %85 = arith.mulf %83, %84 : vector<4x1xf32>
      %86 = vector.broadcast %80 : vector<4x1xf32> to vector<4x128xf32>
      %87 = arith.subf %arg12, %86 : vector<4x128xf32>
      %88 = arith.mulf %80, %80 : vector<4x1xf32>
      %89 = arith.subf %85, %88 : vector<4x1xf32>
      %cst_53 = arith.constant 9.99999974E-6 : f32
      %90 = vector.broadcast %cst_53 : f32 to vector<4x1xf32>
      %91 = arith.addf %89, %90 : vector<4x1xf32>
      %92 = math.rsqrt %91 : vector<4x1xf32>
      %93 = vector.broadcast %92 : vector<4x1xf32> to vector<4x128xf32>
      %94 = arith.mulf %87, %93 : vector<4x128xf32>
      %95 = vector.broadcast %2 : vector<1x128xf32> to vector<4x128xf32>
      %96 = arith.mulf %94, %95 : vector<4x128xf32>
      %97 = vector.broadcast %3 : vector<1x128xf32> to vector<4x128xf32>
      %98 = arith.addf %96, %97 : vector<4x128xf32>
      %99 = arith.truncf %98 : vector<4x128xf32> to vector<4x128xbf16>
      %cst_54 = arith.constant dense<0.000000e+00> : vector<4x128xf32>
      %100 = tpu.matmul %99, %12, %cst_54 {dimension_numbers = #tpu.dot_dimension_numbers<[1], [0], [0], [1], [0, 0, 1, 1], [], []>} : vector<4x128xbf16>, vector<128x128xbf16>, vector<4x128xf32> -> vector<4x128xf32>
      %101 = arith.addf %100, %24 : vector<4x128xf32>
      %cst_55 = arith.constant 0.176776692 : f32
      %102 = vector.broadcast %cst_55 : f32 to vector<4x128xf32>
      %103 = arith.mulf %101, %102 : vector<4x128xf32>
      %104 = arith.truncf %103 : vector<4x128xf32> to vector<4x128xbf16>
      %105 = vector.shape_cast %104 : vector<4x128xbf16> to vector<1x4x128xbf16>
      "tpu.trace_start"() <{level = 10 : i32, message = "bid,bjd->bij"}> : () -> ()
      %cst_56 = arith.constant dense<0.000000e+00> : vector<1x4x16xf32>
      %106 = tpu.matmul %105, %65, %cst_56 {dimension_numbers = #tpu.dot_dimension_numbers<[2], [2], [1], [1], [0, 0, 0, 1, 1, 1], [0], [0]>} : vector<1x4x128xbf16>, vector<1x16x128xbf16>, vector<1x4x16xf32> -> vector<1x4x16xf32>
      "tpu.trace_stop"() : () -> ()
      %cst_57 = arith.constant dense<0xFF800000> : vector<1x16xf32>
      %107 = vector.multi_reduction <maximumf>, %106, %cst_57 [1] : vector<1x4x16xf32> to vector<1x16xf32>
      %108 = vector.shape_cast %107 : vector<1x16xf32> to vector<1x1x16xf32>
      %109 = vector.broadcast %108 : vector<1x1x16xf32> to vector<1x4x16xf32>
      %110 = arith.subf %106, %109 : vector<1x4x16xf32>
      %111 = math.exp %110 : vector<1x4x16xf32>
      %cst_58 = arith.constant dense<0.000000e+00> : vector<1x16xf32>
      %112 = vector.multi_reduction <add>, %111, %cst_58 [1] : vector<1x4x16xf32> to vector<1x16xf32>
      %113 = vector.shape_cast %112 : vector<1x16xf32> to vector<1x1x16xf32>
      %114 = tpu.reciprocal %113 {approx = true} : vector<1x1x16xf32> -> vector<1x1x16xf32>
      %115 = vector.broadcast %114 : vector<1x1x16xf32> to vector<1x4x16xf32>
      %116 = arith.mulf %111, %115 : vector<1x4x16xf32>
      %cst_59 = arith.constant 9.99999993E-9 : f32
      %117 = vector.broadcast %cst_59 : f32 to vector<1x4x16xf32>
      %118 = arith.addf %116, %117 : vector<1x4x16xf32>
      %cst_60 = arith.constant dense<0.000000e+00> : vector<1x4xf32>
      %119 = vector.multi_reduction <add>, %118, %cst_60 [2] : vector<1x4x16xf32> to vector<1x4xf32>
      %120 = vector.shape_cast %119 : vector<1x4xf32> to vector<1x4x1xf32>
      %121 = vector.broadcast %120 : vector<1x4x1xf32> to vector<1x4x16xf32>
      %122 = arith.divf %118, %121 : vector<1x4x16xf32>
      %123 = arith.truncf %122 : vector<1x4x16xf32> to vector<1x4x16xbf16>
      "tpu.trace_start"() <{level = 10 : i32, message = "bij,bjd->bid"}> : () -> ()
      %cst_61 = arith.constant dense<0.000000e+00> : vector<1x4x128xf32>
      %124 = tpu.matmul %123, %70, %cst_61 {dimension_numbers = #tpu.dot_dimension_numbers<[2], [1], [1], [2], [0, 0, 0, 1, 1, 2], [0], [0]>} : vector<1x4x16xbf16>, vector<1x16x128xbf16>, vector<1x4x128xf32> -> vector<1x4x128xf32>
      "tpu.trace_stop"() : () -> ()
      %125 = vector.shape_cast %124 : vector<1x4x128xf32> to vector<4x128xf32>
      %126 = arith.truncf %125 : vector<4x128xf32> to vector<4x128xbf16>
      %127 = arith.truncf %arg12 : vector<4x128xf32> to vector<4x128xbf16>
      %cst_62 = arith.constant dense<0.000000e+00> : vector<4x384xf32>
      %128 = tpu.matmul %126, %18, %cst_62 {dimension_numbers = #tpu.dot_dimension_numbers<[1], [0], [0], [1], [0, 0, 1, 1], [], []>} : vector<4x128xbf16>, vector<128x384xbf16>, vector<4x384xf32> -> vector<4x384xf32>
      %129 = arith.addf %128, %27 : vector<4x384xf32>
      %cst_63 = arith.constant dense<0.000000e+00> : vector<4x384xf32>
      %130 = tpu.matmul %127, %20, %cst_63 {dimension_numbers = #tpu.dot_dimension_numbers<[1], [0], [0], [1], [0, 0, 1, 1], [], []>} : vector<4x128xbf16>, vector<128x384xbf16>, vector<4x384xf32> -> vector<4x384xf32>
      %131 = vector.extract_strided_slice %129 {offsets = [0, 0], sizes = [4, 128], strides = [1, 1]} : vector<4x384xf32> to vector<4x128xf32>
      %132 = vector.extract_strided_slice %130 {offsets = [0, 0], sizes = [4, 128], strides = [1, 1]} : vector<4x384xf32> to vector<4x128xf32>
      %133 = arith.addf %131, %132 : vector<4x128xf32>
      %134 = arith.negf %133 : vector<4x128xf32>
      %135 = math.exp %134 : vector<4x128xf32>
      %cst_64 = arith.constant 1.000000e+00 : f32
      %136 = vector.broadcast %cst_64 : f32 to vector<4x128xf32>
      %137 = arith.addf %136, %135 : vector<4x128xf32>
      %138 = arith.divf %136, %137 : vector<4x128xf32>
      %139 = vector.extract_strided_slice %129 {offsets = [0, 128], sizes = [4, 128], strides = [1, 1]} : vector<4x384xf32> to vector<4x128xf32>
      %140 = vector.extract_strided_slice %130 {offsets = [0, 128], sizes = [4, 128], strides = [1, 1]} : vector<4x384xf32> to vector<4x128xf32>
      %141 = arith.addf %139, %140 : vector<4x128xf32>
      %142 = arith.negf %141 : vector<4x128xf32>
      %143 = math.exp %142 : vector<4x128xf32>
      %cst_65 = arith.constant 1.000000e+00 : f32
      %144 = vector.broadcast %cst_65 : f32 to vector<4x128xf32>
      %145 = arith.addf %144, %143 : vector<4x128xf32>
      %146 = arith.divf %144, %145 : vector<4x128xf32>
      %147 = vector.extract_strided_slice %129 {offsets = [0, 256], sizes = [4, 128], strides = [1, 1]} : vector<4x384xf32> to vector<4x128xf32>
      %148 = vector.extract_strided_slice %130 {offsets = [0, 256], sizes = [4, 128], strides = [1, 1]} : vector<4x384xf32> to vector<4x128xf32>
      %149 = arith.addf %148, %29 : vector<4x128xf32>
      %150 = arith.mulf %138, %149 : vector<4x128xf32>
      %151 = arith.addf %147, %150 : vector<4x128xf32>
      %152 = math.tanh %151 : vector<4x128xf32>
      %cst_66 = arith.constant 1.000000e+00 : f32
      %153 = vector.broadcast %cst_66 : f32 to vector<4x128xf32>
      %154 = arith.subf %153, %146 : vector<4x128xf32>
      %155 = arith.mulf %154, %152 : vector<4x128xf32>
      %156 = arith.mulf %146, %arg12 : vector<4x128xf32>
      %157 = arith.addf %155, %156 : vector<4x128xf32>
      %cst_67 = arith.constant dense<0.000000e+00> : vector<4xf32>
      %158 = vector.multi_reduction <add>, %157, %cst_67 [1] : vector<4x128xf32> to vector<4xf32>
      %159 = vector.shape_cast %158 : vector<4xf32> to vector<4x1xf32>
      %cst_68 = arith.constant 3.125000e-02 : f32
      %160 = vector.broadcast %cst_68 : f32 to vector<4x1xf32>
      %161 = arith.mulf %159, %160 : vector<4x1xf32>
      %162 = arith.mulf %157, %157 : vector<4x128xf32>
      %cst_69 = arith.constant dense<0.000000e+00> : vector<4xf32>
      %163 = vector.multi_reduction <add>, %162, %cst_69 [1] : vector<4x128xf32> to vector<4xf32>
      %164 = vector.shape_cast %163 : vector<4xf32> to vector<4x1xf32>
      %cst_70 = arith.constant 3.125000e-02 : f32
      %165 = vector.broadcast %cst_70 : f32 to vector<4x1xf32>
      %166 = arith.mulf %164, %165 : vector<4x1xf32>
      %167 = vector.broadcast %161 : vector<4x1xf32> to vector<4x128xf32>
      %168 = arith.subf %157, %167 : vector<4x128xf32>
      %169 = arith.mulf %161, %161 : vector<4x1xf32>
      %170 = arith.subf %166, %169 : vector<4x1xf32>
      %cst_71 = arith.constant 9.99999974E-6 : f32
      %171 = vector.broadcast %cst_71 : f32 to vector<4x1xf32>
      %172 = arith.addf %170, %171 : vector<4x1xf32>
      %173 = math.rsqrt %172 : vector<4x1xf32>
      %174 = vector.broadcast %173 : vector<4x1xf32> to vector<4x128xf32>
      %175 = arith.mulf %168, %174 : vector<4x128xf32>
      %176 = vector.broadcast %4 : vector<1x128xf32> to vector<4x128xf32>
      %177 = arith.mulf %175, %176 : vector<4x128xf32>
      %178 = vector.broadcast %5 : vector<1x128xf32> to vector<4x128xf32>
      %179 = arith.addf %177, %178 : vector<4x128xf32>
      %180 = arith.truncf %179 : vector<4x128xf32> to vector<4x128xbf16>
      %cst_72 = arith.constant dense<0.000000e+00> : vector<4x128xf32>
      %181 = tpu.matmul %180, %21, %cst_72 {dimension_numbers = #tpu.dot_dimension_numbers<[1], [0], [0], [1], [0, 0, 1, 1], [], []>} : vector<4x128xbf16>, vector<128x128xbf16>, vector<4x128xf32> -> vector<4x128xf32>
      %182 = arith.addf %181, %32 : vector<4x128xf32>
      %cst_73 = arith.constant 0.000000e+00 : f32
      %183 = vector.broadcast %cst_73 : f32 to vector<4x128xf32>
      %184 = arith.maximumf %182, %183 : vector<4x128xf32>
      %185 = arith.truncf %184 : vector<4x128xf32> to vector<4x128xbf16>
      %cst_74 = arith.constant dense<0.000000e+00> : vector<4x128xf32>
      %186 = tpu.matmul %185, %22, %cst_74 {dimension_numbers = #tpu.dot_dimension_numbers<[1], [0], [0], [1], [0, 0, 1, 1], [], []>} : vector<4x128xbf16>, vector<128x128xbf16>, vector<4x128xf32> -> vector<4x128xf32>
      %187 = arith.addf %157, %186 : vector<4x128xf32>
      %188 = arith.addf %187, %34 : vector<4x128xf32>
      scf.yield %188 : vector<4x128xf32>
    }
    %75 = vector.shape_cast %74 : vector<4x128xf32> to vector<1x4x128xf32>
    %c0_46 = arith.constant 0 : index
    %c0_47 = arith.constant 0 : index
    %c0_48 = arith.constant 0 : index
    %76 = vector.load %arg10[%c0_46, %c0_47, %c0_48] : memref<1x4x128xf32, #tpu.memory_space<vmem>>, vector<1x4x128xf32>
    tpu.vector_store %arg10[%c0_46, %c0_47, %c0_48], %75 {strides = array<i32>} : memref<1x4x128xf32, #tpu.memory_space<vmem>>, vector<1x4x128xf32>,
    return
  }
  func.func @transform_0(%arg0: i32) -> (i32, i32, i32) {
    %c0_i32 = arith.constant 0 : i32
    %c0_i32_0 = arith.constant 0 : i32
    %c0_i32_1 = arith.constant 0 : i32
    return %arg0, %c0_i32, %c0_i32_0 : i32, i32, i32
  }
  func.func @transform_1(%arg0: i32) -> (i32, i32, i32) {
    %c0_i32 = arith.constant 0 : i32
    %c0_i32_0 = arith.constant 0 : i32
    %c0_i32_1 = arith.constant 0 : i32
    return %arg0, %c0_i32, %c0_i32_0 : i32, i32, i32
  }
  func.func @transform_2(%arg0: i32) -> (i32, i32) {
    %c0_i32 = arith.constant 0 : i32
    %c0_i32_0 = arith.constant 0 : i32
    %c0_i32_1 = arith.constant 0 : i32
    return %c0_i32, %c0_i32_0 : i32, i32
  }
  func.func @transform_3(%arg0: i32) -> (i32, i32) {
    %c0_i32 = arith.constant 0 : i32
    %c0_i32_0 = arith.constant 0 : i32
    %c0_i32_1 = arith.constant 0 : i32
    return %c0_i32, %c0_i32_0 : i32, i32
  }
  func.func @transform_4(%arg0: i32) -> (i32, i32) {
    %c0_i32 = arith.constant 0 : i32
    %c0_i32_0 = arith.constant 0 : i32
    %c0_i32_1 = arith.constant 0 : i32
    return %c0_i32, %c0_i32_0 : i32, i32
  }
  func.func @transform_5(%arg0: i32) -> (i32, i32, i32) {
    %c0_i32 = arith.constant 0 : i32
    %c0_i32_0 = arith.constant 0 : i32
    %c0_i32_1 = arith.constant 0 : i32
    %c0_i32_2 = arith.constant 0 : i32
    return %c0_i32, %c0_i32_0, %c0_i32_1 : i32, i32, i32
  }
  func.func @transform_6(%arg0: i32) -> (i32, i32, i32) {
    %c0_i32 = arith.constant 0 : i32
    %c0_i32_0 = arith.constant 0 : i32
    %c0_i32_1 = arith.constant 0 : i32
    %c0_i32_2 = arith.constant 0 : i32
    return %c0_i32, %c0_i32_0, %c0_i32_1 : i32, i32, i32
  }
  func.func @transform_7(%arg0: i32) -> (i32, i32) {
    %c0_i32 = arith.constant 0 : i32
    %c0_i32_0 = arith.constant 0 : i32
    %c0_i32_1 = arith.constant 0 : i32
    return %c0_i32, %c0_i32_0 : i32, i32
  }
  func.func @transform_8(%arg0: i32) -> (i32, i32) {
    %c0_i32 = arith.constant 0 : i32
    %c0_i32_0 = arith.constant 0 : i32
    %c0_i32_1 = arith.constant 0 : i32
    return %c0_i32, %c0_i32_0 : i32, i32
  }
  func.func @transform_9(%arg0: i32) -> (i32, i32, i32) {
    %c0_i32 = arith.constant 0 : i32
    %c0_i32_0 = arith.constant 0 : i32
    %c0_i32_1 = arith.constant 0 : i32
    return %arg0, %c0_i32, %c0_i32_0 : i32, i32, i32
  }
}

</mosaic_0001>

<llo_original>
// kernel: tpu_custom_call.1
$region0: #{tpu_custom_call.1}
  #allocation0 [shape = 'u32[]', space=smem, size = 0x4, offset = 0x4, fixed_abs, tag = 'smem constant byte address 0x4 - core index']
  #allocation1 [shape = 'u32[144,128]{1,0:T(1,128)}', space=vmem, size = 0x12000, scoped, tag = 'internal scratch']
  %s0 = inlined_call_operand.hbm [shape: bf16[2,16,128], index: 0, kind: input, shape index: {}]
  %s1 = inlined_call_operand.hbm [shape: f32[2,4,128], index: 1, kind: input, shape index: {}]
  %s2 = inlined_call_operand.hbm [shape: f32[11,128], index: 2, kind: input, shape index: {}]
  %s3 = inlined_call_operand.vmem [shape: f32[1,384], index: 3, kind: input, shape index: {}]
  %s4 = inlined_call_operand.vmem [shape: f32[1,128], index: 4, kind: input, shape index: {}]
  %s5 = inlined_call_operand.hbm [shape: bf16[3,128,128], index: 5, kind: input, shape index: {}]
  %s6 = inlined_call_operand.hbm [shape: bf16[2,128,384], index: 6, kind: input, shape index: {}]
  %s7 = inlined_call_operand.hbm [shape: bf16[128,128], index: 7, kind: input, shape index: {}]
  %s8 = inlined_call_operand.hbm [shape: bf16[128,128], index: 8, kind: input, shape index: {}]
  %s9 = inlined_call_operand.hbm [shape: f32[2,4,128], index: 9, kind: output, shape index: {}]
  %s10 = sld [smem:[#allocation0]]
  $region104: #{tpu_custom_call.1} parent=0
    _
  %s12 = ssub.s32 1, %s10
  %s13 = scalar_select 0, %s12, %s10
  $region1: #{tpu_custom_call.1} parent=0
    #allocation2 [shape = 'u8[8192]{0}', space=vmem, size = 0x2000, scoped, tag = 'input window, operand 0']
    #allocation3 [shape = 's32[2]{0}', space=sflag, size = 0x8, scoped, tag = 'scoped memory for tpu_custom_call.1']
    #allocation4 [shape = 's32[2]{0}', space=sflag, size = 0x8, scoped, tag = 'scoped memory for tpu_custom_call.1']
    #allocation5 [shape = 'u8[4096]{0}', space=vmem, size = 0x1000, scoped, tag = 'input window, operand 1']
    #allocation6 [shape = 's32[2]{0}', space=sflag, size = 0x8, scoped, tag = 'scoped memory for tpu_custom_call.1']
    #allocation7 [shape = 'u8[8192]{0}', space=vmem, size = 0x2000, scoped, tag = 'input window, operand 2, single buffered']
    #allocation8 [shape = 'u8[98304]{0}', space=vmem, size = 0x18000, scoped, tag = 'input window, operand 5, single buffered']
    #allocation9 [shape = 's32[1]{0}', space=sflag, size = 0x4, scoped, tag = 'scoped memory for tpu_custom_call.1']
    #allocation10 [shape = 'u8[196608]{0}', space=vmem, size = 0x30000, scoped, tag = 'input window, operand 6, single buffered']
    #allocation11 [shape = 'u8[32768]{0}', space=vmem, size = 0x8000, scoped, tag = 'input window, operand 7, single buffered']
    #allocation12 [shape = 's32[1]{0}', space=sflag, size = 0x4, scoped, tag = 'scoped memory for tpu_custom_call.1']
    #allocation13 [shape = 'u8[32768]{0}', space=vmem, size = 0x8000, scoped, tag = 'input window, operand 8, single buffered']
    #allocation14 [shape = 'u8[4096]{0}', space=vmem, size = 0x1000, scoped, tag = 'output window, operand 0']
    %14 = vsyncpa [#allocation3], 0
    %s15 = scalar_lea.sflag [#allocation3], 1
    %16 = vsyncpa %s15, 0
    %17 = vsyncpa [#allocation6], 0
    %s18 = scalar_lea.sflag [#allocation6], 1
    %19 = vsyncpa %s18, 0
    %20 = vsyncpa [#allocation9], 0
    %21 = vsyncpa [#allocation12], 0
    %22 = vsyncpa [#allocation4], 0
    %s23 = scalar_lea.sflag [#allocation4], 1
    %24 = vsyncpa %s23, 0
    loop: start=0, step=1, limit=4
    $region2: #{tpu_custom_call.1} parent=1 // loop_pre_header
      _
    $region3: #{tpu_custom_call.1} parent=1 // loop_header
      %s26 = sphi 0, %s30
      %p27 = scmp.ge.s32.totalorder %s26, 4
      %s36 = sphi 0, %s38
      %s39 = sphi 0, %s36
      %s40 = sphi 0, %s39
      %s56 = sphi 0, %s40
      %s62 = sphi 0, %s64
      %s65 = sphi 0, %s62
      %s66 = sphi 0, %s65
      %s82 = sphi 0, %s66
      %s86 = sphi 0, %s86
      %s88 = sphi 0, %s86
      %s89 = sphi 0, %s88
      %s103 = sphi 0, %s89
      %s107 = sphi 0, %s107
      %s109 = sphi 0, %s107
      %s110 = sphi 0, %s109
      %s124 = sphi 0, %s110
      %s128 = sphi 0, %s128
      %s130 = sphi 0, %s128
      %s131 = sphi 0, %s130
      %s145 = sphi 0, %s131
      %s149 = sphi 0, %s149
      %s151 = sphi 0, %s149
      %s152 = sphi 0, %s151
      %s166 = sphi 0, %s152
      %s170 = sphi 0, %s170
      %s172 = sphi 0, %s170
      %s173 = sphi 0, %s172
      %s187 = sphi 0, %s173
      %s191 = sphi 0, %s191
      %s193 = sphi 0, %s191
      %s194 = sphi 0, %s193
      %s208 = sphi 0, %s194
      %s212 = sphi 0, %s212
      %s214 = sphi 0, %s212
      %s215 = sphi 0, %s214
      %s229 = sphi 0, %s215
      %s235 = sphi 0, %s237
      %s238 = sphi 0, %s235
      %s239 = sphi 0, %s238
      %s255 = sphi 0, %s239
    $region4: #{tpu_custom_call.1} parent=1 // loop_header_branch
      %29 = sbr.rel (%p27) target = $region8
    $region5: #{tpu_custom_call.1} parent=1 // loop_body
      %s31 = ssub.s32 %s26, 1
      %s32 = ssub.s32 %s26, 2
      %s33 = sadd.s32 %s26, 1
      %s34 = ssub.s32 %s26, %s33
      %p35 = scmp.eq.s32.totalorder %s34, 0
      %s37 = sadd.s32 %s36, 1
      %s38 = scalar_select %p35, %s36, %s37
      %p41 = pneg %p35
      %p42 = scmp.eq.s32.totalorder %s26, 1
      %p43 = por %p41, %p42
      %p44 = scmp.ne.s32.totalorder %s36, %s39
      %p45 = scmp.eq.s32.totalorder %s26, 0
      %p46 = por %p44, %p45
      %p47 = scmp.ne.s32.totalorder %s36, %s39
      %p48 = scmp.eq.s32.totalorder %s31, 1
      %p49 = por %p47, %p48
      %p50 = scmp.ne.s32.totalorder %s39, %s40
      %p51 = scmp.eq.s32.totalorder %s31, 0
      %p52 = por %p50, %p51
      %p53 = scmp.ne.s32.totalorder %s39, %s40
      %p54 = scmp.eq.s32.totalorder %s32, 1
      %p55 = por %p53, %p54
      %p57 = scmp.ne.s32.totalorder %s40, %s56
      %p58 = scmp.eq.s32.totalorder %s32, 0
      %p59 = por %p57, %p58
      %s60 = ssub.s32 %s26, %s33
      %p61 = scmp.eq.s32.totalorder %s60, 0
      %s63 = sadd.s32 %s62, 1
      %s64 = scalar_select %p61, %s62, %s63
      %p67 = pneg %p61
      %p68 = scmp.eq.s32.totalorder %s26, 1
      %p69 = por %p67, %p68
      %p70 = scmp.ne.s32.totalorder %s62, %s65
      %p71 = scmp.eq.s32.totalorder %s26, 0
      %p72 = por %p70, %p71
      %p73 = scmp.ne.s32.totalorder %s62, %s65
      %p74 = scmp.eq.s32.totalorder %s31, 1
      %p75 = por %p73, %p74
      %p76 = scmp.ne.s32.totalorder %s65, %s66
      %p77 = scmp.eq.s32.totalorder %s31, 0
      %p78 = por %p76, %p77
      %p79 = scmp.ne.s32.totalorder %s65, %s66
      %p80 = scmp.eq.s32.totalorder %s32, 1
      %p81 = por %p79, %p80
      %p83 = scmp.ne.s32.totalorder %s66, %s82
      %p84 = scmp.eq.s32.totalorder %s32, 0
      %p85 = por %p83, %p84
      %s87 = sadd.s32 %s86, 1
      %p90 = scmp.eq.s32.totalorder %s26, 1
      %p91 = scmp.ne.s32.totalorder %s86, %s88
      %p92 = scmp.eq.s32.totalorder %s26, 0
      %p93 = por %p91, %p92
      %p94 = scmp.ne.s32.totalorder %s86, %s88
      %p95 = scmp.eq.s32.totalorder %s31, 1
      %p96 = por %p94, %p95
      %p97 = scmp.ne.s32.totalorder %s88, %s89
      %p98 = scmp.eq.s32.totalorder %s31, 0
      %p99 = por %p97, %p98
      %p100 = scmp.ne.s32.totalorder %s88, %s89
      %p101 = scmp.eq.s32.totalorder %s32, 1
      %p102 = por %p100, %p101
      %p104 = scmp.ne.s32.totalorder %s89, %s103
      %p105 = scmp.eq.s32.totalorder %s32, 0
      %p106 = por %p104, %p105
      %s108 = sadd.s32 %s107, 1
      %p111 = scmp.eq.s32.totalorder %s26, 1
      %p112 = scmp.ne.s32.totalorder %s107, %s109
      %p113 = scmp.eq.s32.totalorder %s26, 0
      %p114 = por %p112, %p113
      %p115 = scmp.ne.s32.totalorder %s107, %s109
      %p116 = scmp.eq.s32.totalorder %s31, 1
      %p117 = por %p115, %p116
      %p118 = scmp.ne.s32.totalorder %s109, %s110
      %p119 = scmp.eq.s32.totalorder %s31, 0
      %p120 = por %p118, %p119
      %p121 = scmp.ne.s32.totalorder %s109, %s110
      %p122 = scmp.eq.s32.totalorder %s32, 1
      %p123 = por %p121, %p122
      %p125 = scmp.ne.s32.totalorder %s110, %s124
      %p126 = scmp.eq.s32.totalorder %s32, 0
      %p127 = por %p125, %p126
      %s129 = sadd.s32 %s128, 1
      %p132 = scmp.eq.s32.totalorder %s26, 1
      %p133 = scmp.ne.s32.totalorder %s128, %s130
      %p134 = scmp.eq.s32.totalorder %s26, 0
      %p135 = por %p133, %p134
      %p136 = scmp.ne.s32.totalorder %s128, %s130
      %p137 = scmp.eq.s32.totalorder %s31, 1
      %p138 = por %p136, %p137
      %p139 = scmp.ne.s32.totalorder %s130, %s131
      %p140 = scmp.eq.s32.totalorder %s31, 0
      %p141 = por %p139, %p140
      %p142 = scmp.ne.s32.totalorder %s130, %s131
      %p143 = scmp.eq.s32.totalorder %s32, 1
      %p144 = por %p142, %p143
      %p146 = scmp.ne.s32.totalorder %s131, %s145
      %p147 = scmp.eq.s32.totalorder %s32, 0
      %p148 = por %p146, %p147
      %s150 = sadd.s32 %s149, 1
      %p153 = scmp.eq.s32.totalorder %s26, 1
      %p154 = scmp.ne.s32.totalorder %s149, %s151
      %p155 = scmp.eq.s32.totalorder %s26, 0
      %p156 = por %p154, %p155
      %p157 = scmp.ne.s32.totalorder %s149, %s151
      %p158 = scmp.eq.s32.totalorder %s31, 1
      %p159 = por %p157, %p158
      %p160 = scmp.ne.s32.totalorder %s151, %s152
      %p161 = scmp.eq.s32.totalorder %s31, 0
      %p162 = por %p160, %p161
      %p163 = scmp.ne.s32.totalorder %s151, %s152
      %p164 = scmp.eq.s32.totalorder %s32, 1
      %p165 = por %p163, %p164
      %p167 = scmp.ne.s32.totalorder %s152, %s166
      %p168 = scmp.eq.s32.totalorder %s32, 0
      %p169 = por %p167, %p168
      %s171 = sadd.s32 %s170, 1
      %p174 = scmp.eq.s32.totalorder %s26, 1
      %p175 = scmp.ne.s32.totalorder %s170, %s172
      %p176 = scmp.eq.s32.totalorder %s26, 0
      %p177 = por %p175, %p176
      %p178 = scmp.ne.s32.totalorder %s170, %s172
      %p179 = scmp.eq.s32.totalorder %s31, 1
      %p180 = por %p178, %p179
      %p181 = scmp.ne.s32.totalorder %s172, %s173
      %p182 = scmp.eq.s32.totalorder %s31, 0
      %p183 = por %p181, %p182
      %p184 = scmp.ne.s32.totalorder %s172, %s173
      %p185 = scmp.eq.s32.totalorder %s32, 1
      %p186 = por %p184, %p185
      %p188 = scmp.ne.s32.totalorder %s173, %s187
      %p189 = scmp.eq.s32.totalorder %s32, 0
      %p190 = por %p188, %p189
      %s192 = sadd.s32 %s191, 1
      %p195 = scmp.eq.s32.totalorder %s26, 1
      %p196 = scmp.ne.s32.totalorder %s191, %s193
      %p197 = scmp.eq.s32.totalorder %s26, 0
      %p198 = por %p196, %p197
      %p199 = scmp.ne.s32.totalorder %s191, %s193
      %p200 = scmp.eq.s32.totalorder %s31, 1
      %p201 = por %p199, %p200
      %p202 = scmp.ne.s32.totalorder %s193, %s194
      %p203 = scmp.eq.s32.totalorder %s31, 0
      %p204 = por %p202, %p203
      %p205 = scmp.ne.s32.totalorder %s193, %s194
      %p206 = scmp.eq.s32.totalorder %s32, 1
      %p207 = por %p205, %p206
      %p209 = scmp.ne.s32.totalorder %s194, %s208
      %p210 = scmp.eq.s32.totalorder %s32, 0
      %p211 = por %p209, %p210
      %s213 = sadd.s32 %s212, 1
      %p216 = scmp.eq.s32.totalorder %s26, 1
      %p217 = scmp.ne.s32.totalorder %s212, %s214
      %p218 = scmp.eq.s32.totalorder %s26, 0
      %p219 = por %p217, %p218
      %p220 = scmp.ne.s32.totalorder %s212, %s214
      %p221 = scmp.eq.s32.totalorder %s31, 1
      %p222 = por %p220, %p221
      %p223 = scmp.ne.s32.totalorder %s214, %s215
      %p224 = scmp.eq.s32.totalorder %s31, 0
      %p225 = por %p223, %p224
      %p226 = scmp.ne.s32.totalorder %s214, %s215
      %p227 = scmp.eq.s32.totalorder %s32, 1
      %p228 = por %p226, %p227
      %p230 = scmp.ne.s32.totalorder %s215, %s229
      %p231 = scmp.eq.s32.totalorder %s32, 0
      %p232 = por %p230, %p231
      %s233 = ssub.s32 %s26, %s33
      %p234 = scmp.eq.s32.totalorder %s233, 0
      %s236 = sadd.s32 %s235, 1
      %s237 = scalar_select %p234, %s235, %s236
      %p240 = pneg %p234
      %p241 = scmp.eq.s32.totalorder %s26, 1
      %p242 = por %p240, %p241
      %p243 = scmp.ne.s32.totalorder %s235, %s238
      %p244 = scmp.eq.s32.totalorder %s26, 0
      %p245 = por %p243, %p244
      %p246 = scmp.ne.s32.totalorder %s235, %s238
      %p247 = scmp.eq.s32.totalorder %s31, 1
      %p248 = por %p246, %p247
      %p249 = scmp.ne.s32.totalorder %s238, %s239
      %p250 = scmp.eq.s32.totalorder %s31, 0
      %p251 = por %p249, %p250
      %p252 = scmp.ne.s32.totalorder %s238, %s239
      %p253 = scmp.eq.s32.totalorder %s32, 1
      %p254 = por %p252, %p253
      %p256 = scmp.ne.s32.totalorder %s239, %s255
      %p257 = scmp.eq.s32.totalorder %s32, 0
      %p258 = por %p256, %p257
      %p259 = scmp.le.s32.totalorder 1, %s26
      %p260 = scmp.lt.s32.totalorder %s26, 3
      %p261 = pnand %p259, %p260
      %p262 = pneg %p261
      // Predicated region
      $region9: #{tpu_custom_call.1} parent=5 // pred_check
        _
      $region10: #{tpu_custom_call.1} parent=5 // pred_check_branch
        %264 = sbr.rel (%p261) target = $region12
      $region11: #{tpu_custom_call.1} parent=5 // pred_region
        %s265 = ssub.s32 %s26, 1
        // Predicated region
        $region13: #{tpu_custom_call.1} parent=11 // pred_check
          %p266 = pneg %p99
        $region14: #{tpu_custom_call.1} parent=11 // pred_check_branch
          %268 = sbr.rel (%p266) target = $region16
        $region15: #{tpu_custom_call.1} parent=11 // pred_region
          %s270 = ssub.s32 256, 256
          %271 = vsyncadd [#allocation6], %s270
          %s272 = sshll.u32 [#allocation7], 4
          %s273 = int_to_ptr.vmem [resolvable:$true] %s272
          %278 = dma.hbm_to_vmem [thread:$0]  %s2, 256, %s273, [#allocation6], 128, 128, 8
        $region16: #{tpu_custom_call.1} parent=11 // pred_fallthru
          _
        // Predicated region
        $region17: #{tpu_custom_call.1} parent=11 // pred_check
          %p279 = pneg %p120
        $region18: #{tpu_custom_call.1} parent=11 // pred_check_branch
          %281 = sbr.rel (%p279) target = $region20
        $region19: #{tpu_custom_call.1} parent=11 // pred_region
          _
        $region20: #{tpu_custom_call.1} parent=11 // pred_fallthru
          _
        // Predicated region
        $region21: #{tpu_custom_call.1} parent=11 // pred_check
          %p282 = pneg %p141
        $region22: #{tpu_custom_call.1} parent=11 // pred_check_branch
          %284 = sbr.rel (%p282) target = $region24
        $region23: #{tpu_custom_call.1} parent=11 // pred_region
          _
        $region24: #{tpu_custom_call.1} parent=11 // pred_fallthru
          _
        // Predicated region
        $region25: #{tpu_custom_call.1} parent=11 // pred_check
          %p285 = pneg %p162
        $region26: #{tpu_custom_call.1} parent=11 // pred_check_branch
          %287 = sbr.rel (%p285) target = $region28
        $region27: #{tpu_custom_call.1} parent=11 // pred_region
          %s289 = ssub.s32 3072, 3072
          %290 = vsyncadd [#allocation9], %s289
          %s291 = sshll.u32 [#allocation8], 4
          %s292 = int_to_ptr.vmem [resolvable:$true] %s291
          %297 = dma.hbm_to_vmem [thread:$0]  %s5, 3072, %s292, [#allocation9], 64, 64, 4
        $region28: #{tpu_custom_call.1} parent=11 // pred_fallthru
          _
        // Predicated region
        $region29: #{tpu_custom_call.1} parent=11 // pred_check
          %p298 = pneg %p183
        $region30: #{tpu_custom_call.1} parent=11 // pred_check_branch
          %300 = sbr.rel (%p298) target = $region32
        $region31: #{tpu_custom_call.1} parent=11 // pred_region
          %s302 = ssub.s32 6144, 6144
          %303 = vsyncadd [#allocation9], %s302
          %s304 = sshll.u32 [#allocation10], 4
          %s305 = int_to_ptr.vmem [resolvable:$true] %s304
          %310 = dma.hbm_to_vmem [thread:$0]  %s6, 6144, %s305, [#allocation9], 192, 192, 12
        $region32: #{tpu_custom_call.1} parent=11 // pred_fallthru
          _
        // Predicated region
        $region33: #{tpu_custom_call.1} parent=11 // pred_check
          %p311 = pneg %p204
        $region34: #{tpu_custom_call.1} parent=11 // pred_check_branch
          %313 = sbr.rel (%p311) target = $region36
        $region35: #{tpu_custom_call.1} parent=11 // pred_region
          %s315 = ssub.s32 1024, 1024
          %316 = vsyncadd [#allocation12], %s315
          %s317 = sshll.u32 [#allocation11], 4
          %s318 = int_to_ptr.vmem [resolvable:$true] %s317
          %323 = dma.hbm_to_vmem [thread:$0]  %s7, 1024, %s318, [#allocation12], 64, 64, 4
        $region36: #{tpu_custom_call.1} parent=11 // pred_fallthru
          _
        // Predicated region
        $region37: #{tpu_custom_call.1} parent=11 // pred_check
          %p324 = pneg %p225
        $region38: #{tpu_custom_call.1} parent=11 // pred_check_branch
          %326 = sbr.rel (%p324) target = $region40
        $region39: #{tpu_custom_call.1} parent=11 // pred_region
          %s328 = ssub.s32 1024, 1024
          %329 = vsyncadd [#allocation12], %s328
          %s330 = sshll.u32 [#allocation13], 4
          %s331 = int_to_ptr.vmem [resolvable:$true] %s330
          %336 = dma.hbm_to_vmem [thread:$0]  %s8, 1024, %s331, [#allocation12], 64, 64, 4
        $region40: #{tpu_custom_call.1} parent=11 // pred_fallthru
          _
      $region12: #{tpu_custom_call.1} parent=5 // pred_fallthru
        _
      %p337 = scmp.lt.s32.totalorder %s26, 2
      // Predicated region
      $region41: #{tpu_custom_call.1} parent=5 // pred_check
        %p338 = pneg %p337
      $region42: #{tpu_custom_call.1} parent=5 // pred_check_branch
        %340 = sbr.rel (%p338) target = $region44
      $region43: #{tpu_custom_call.1} parent=5 // pred_region
        // Predicated region
        $region45: #{tpu_custom_call.1} parent=43 // pred_check
          %p341 = pneg %p46
        $region46: #{tpu_custom_call.1} parent=43 // pred_check_branch
          %343 = sbr.rel (%p341) target = $region48
        $region47: #{tpu_custom_call.1} parent=43 // pred_region
          %s344 = sand.u32 %s36, 1
          %s345 = scalar_lea.sflag [#allocation3], %s344
          %s346 = sand.u32 %s36, 1
          %s347 = smul.addr %s346, 8
          %s348 = scalar_lea.vmem [#allocation2], %s347
          %s350 = ssub.s32 128, 128
          %351 = vsyncadd %s345, %s350
          %s352 = smul.addr %s26, 2
          %s353 = smul.addr %s352, 64
          %s354 = scalar_lea.hbm %s0, %s353
          %s355 = sshll.u32 %s348, 4
          %s356 = int_to_ptr.vmem [resolvable:$true] %s355
          %361 = dma.hbm_to_vmem [thread:$0]  %s354, 128, %s356, %s345, 64, 64, 4
        $region48: #{tpu_custom_call.1} parent=43 // pred_fallthru
          _
        // Predicated region
        $region49: #{tpu_custom_call.1} parent=43 // pred_check
          %p362 = pneg %p72
        $region50: #{tpu_custom_call.1} parent=43 // pred_check_branch
          %364 = sbr.rel (%p362) target = $region52
        $region51: #{tpu_custom_call.1} parent=43 // pred_region
          %s365 = sand.u32 %s26, 1
          %s366 = scalar_lea.sflag [#allocation6], %s365
          %s367 = sand.u32 %s62, 1
          %s368 = smul.addr %s367, 4
          %s369 = scalar_lea.vmem [#allocation5], %s368
          %s371 = ssub.s32 64, 64
          %372 = vsyncadd %s366, %s371
          %s373 = smul.addr %s26, 64
          %s374 = scalar_lea.hbm %s1, %s373
          %s376 = sshll.u32 %s369, 4
          %s377 = int_to_ptr.vmem [resolvable:$true] %s376
          %379 = dma.hbm_to_vmem [thread:$0]  %s374, 64, %s377, %s366
        $region52: #{tpu_custom_call.1} parent=43 // pred_fallthru
          _
      $region44: #{tpu_custom_call.1} parent=5 // pred_fallthru
        _
      %p380 = scmp.le.s32.totalorder 1, %s26
      %p381 = scmp.lt.s32.totalorder %s26, 3
      %p382 = pnand %p380, %p381
      %p383 = pneg %p382
      // Predicated region
      $region53: #{tpu_custom_call.1} parent=5 // pred_check
        _
      $region54: #{tpu_custom_call.1} parent=5 // pred_check_branch
        %385 = sbr.rel (%p382) target = $region56
      $region55: #{tpu_custom_call.1} parent=5 // pred_region
        %s386 = ssub.s32 %s26, 1
        %s387 = sand.u32 %s39, 1
        %s388 = scalar_lea.sflag [#allocation3], %s387
        %s389 = sand.u32 %s39, 1
        %s390 = smul.addr %s389, 8
        %s391 = scalar_lea.vmem [#allocation2], %s390
        // Predicated region
        $region57: #{tpu_custom_call.1} parent=55 // pred_check
          %p392 = pneg %p52
        $region58: #{tpu_custom_call.1} parent=55 // pred_check_branch
          %394 = sbr.rel (%p392) target = $region60
        $region59: #{tpu_custom_call.1} parent=55 // pred_region
          %395 = dma.done %s388, 128
        $region60: #{tpu_custom_call.1} parent=55 // pred_fallthru
          _
        %s396 = sand.u32 %s31, 1
        %s397 = scalar_lea.sflag [#allocation6], %s396
        %s398 = sand.u32 %s65, 1
        %s399 = smul.addr %s398, 4
        %s400 = scalar_lea.vmem [#allocation5], %s399
        // Predicated region
        $region61: #{tpu_custom_call.1} parent=55 // pred_check
          %p401 = pneg %p78
        $region62: #{tpu_custom_call.1} parent=55 // pred_check_branch
          %403 = sbr.rel (%p401) target = $region64
        $region63: #{tpu_custom_call.1} parent=55 // pred_region
          %404 = dma.done %s397, 64
        $region64: #{tpu_custom_call.1} parent=55 // pred_fallthru
          _
        // Predicated region
        $region65: #{tpu_custom_call.1} parent=55 // pred_check
          %p405 = pneg %p99
        $region66: #{tpu_custom_call.1} parent=55 // pred_check_branch
          %407 = sbr.rel (%p405) target = $region68
        $region67: #{tpu_custom_call.1} parent=55 // pred_region
          %408 = dma.done [#allocation6], 256
        $region68: #{tpu_custom_call.1} parent=55 // pred_fallthru
          _
        // Predicated region
        $region69: #{tpu_custom_call.1} parent=55 // pred_check
          %p409 = pneg %p162
        $region70: #{tpu_custom_call.1} parent=55 // pred_check_branch
          %411 = sbr.rel (%p409) target = $region72
        $region71: #{tpu_custom_call.1} parent=55 // pred_region
          %412 = dma.done [#allocation9], 3072
        $region72: #{tpu_custom_call.1} parent=55 // pred_fallthru
          _
        // Predicated region
        $region73: #{tpu_custom_call.1} parent=55 // pred_check
          %p413 = pneg %p183
        $region74: #{tpu_custom_call.1} parent=55 // pred_check_branch
          %415 = sbr.rel (%p413) target = $region76
        $region75: #{tpu_custom_call.1} parent=55 // pred_region
          %416 = dma.done [#allocation9], 6144
        $region76: #{tpu_custom_call.1} parent=55 // pred_fallthru
          _
        // Predicated region
        $region77: #{tpu_custom_call.1} parent=55 // pred_check
          %p417 = pneg %p204
        $region78: #{tpu_custom_call.1} parent=55 // pred_check_branch
          %419 = sbr.rel (%p417) target = $region80
        $region79: #{tpu_custom_call.1} parent=55 // pred_region
          %420 = dma.done [#allocation12], 1024
        $region80: #{tpu_custom_call.1} parent=55 // pred_fallthru
          _
        // Predicated region
        $region81: #{tpu_custom_call.1} parent=55 // pred_check
          %p421 = pneg %p225
        $region82: #{tpu_custom_call.1} parent=55 // pred_check_branch
          %423 = sbr.rel (%p421) target = $region84
        $region83: #{tpu_custom_call.1} parent=55 // pred_region
          %424 = dma.done [#allocation12], 1024
        $region84: #{tpu_custom_call.1} parent=55 // pred_fallthru
          _
        %s425 = sand.u32 %s39, 1
        %s426 = scalar_lea.sflag [#allocation3], %s425
        %s427 = sand.u32 %s39, 1
        %s428 = smul.addr %s427, 8
        %s429 = scalar_lea.vmem [#allocation2], %s428
        %p430 = pneg %p52
        %p431 = pneg %p49
        %s432 = sand.u32 %s31, 1
        %s433 = scalar_lea.sflag [#allocation6], %s432
        %s434 = sand.u32 %s65, 1
        %s435 = smul.addr %s434, 4
        %s436 = scalar_lea.vmem [#allocation5], %s435
        %p437 = pneg %p78
        %p438 = pneg %p75
        %p439 = pneg %p99
        %p440 = pneg %p96
        %p441 = pneg %p120
        %p442 = pneg %p117
        %p443 = pneg %p141
        %p444 = pneg %p138
        %p445 = pneg %p162
        %p446 = pneg %p159
        %p447 = pneg %p183
        %p448 = pneg %p180
        %p449 = pneg %p204
        %p450 = pneg %p201
        %p451 = pneg %p225
        %p452 = pneg %p222
        %p453 = pneg %p251
        %p454 = pneg %p248
        %s455 = sand.u32 %s238, 1
        %s456 = scalar_lea.sflag [#allocation4], %s455
        %s457 = sand.u32 %s238, 1
        %s458 = smul.addr %s457, 4
        %s459 = scalar_lea.vmem [#allocation14], %s458
        %v461 = vld [vmem:[#allocation7] sm:$0x1]
        %v462 = vld [vmem:[#allocation7 + $0x1] sm:$0x1]
        %v463 = vld [vmem:[#allocation7 + $0x2] sm:$0x1]
        %v464 = vld [vmem:[#allocation7 + $0x3] sm:$0x1]
        %v465 = vld [vmem:[#allocation7 + $0x4] sm:$0x1]
        %v466 = vld [vmem:[#allocation7 + $0x5] sm:$0x1]
        %v467 = vld [vmem:[#allocation7 + $0x6] sm:$0x1]
        %v468 = vld [vmem:[#allocation7 + $0x7] sm:$0x1]
        %v469 = vld [vmem:[#allocation7 + $0x8] sm:$0x1]
        %v470 = vld [vmem:[#allocation7 + $0x9] sm:$0x1]
        %v471 = vld [vmem:[#allocation7 + $0xa] sm:$0x1]
        %v472 = vld [vmem:[#allocation8] sm:$0xf]
        %v473 = vld [vmem:[#allocation8 + $0x4] sm:$0xf]
        %v474 = vld [vmem:[#allocation8 + $0x8] sm:$0xf]
        %v475 = vld [vmem:[#allocation8 + $0xc] sm:$0xf]
        %v476 = vld [vmem:[#allocation8 + $0x10] sm:$0xf]
        %v477 = vld [vmem:[#allocation8 + $0x14] sm:$0xf]
        %v478 = vld [vmem:[#allocation8 + $0x18] sm:$0xf]
        %v479 = vld [vmem:[#allocation8 + $0x1c] sm:$0xf]
        %v480 = vld [vmem:[#allocation8 + $0x20] sm:$0xf]
        %v481 = vld [vmem:[#allocation8 + $0x24] sm:$0xf]
        %v482 = vld [vmem:[#allocation8 + $0x28] sm:$0xf]
        %v483 = vld [vmem:[#allocation8 + $0x2c] sm:$0xf]
        %v484 = vld [vmem:[#allocation8 + $0x30] sm:$0xf]
        %v485 = vld [vmem:[#allocation8 + $0x34] sm:$0xf]
        %v486 = vld [vmem:[#allocation8 + $0x38] sm:$0xf]
        %v487 = vld [vmem:[#allocation8 + $0x3c] sm:$0xf]
        %s488 = scalar_lea.vmem [#allocation8], 64
        %v489 = vld [vmem:[%s488] sm:$0xf]
        %v490 = vld [vmem:[%s488 + $0x4] sm:$0xf]
        %v491 = vld [vmem:[%s488 + $0x8] sm:$0xf]
        %v492 = vld [vmem:[%s488 + $0xc] sm:$0xf]
        %v493 = vld [vmem:[%s488 + $0x10] sm:$0xf]
        %v494 = vld [vmem:[%s488 + $0x14] sm:$0xf]
        %v495 = vld [vmem:[%s488 + $0x18] sm:$0xf]
        %v496 = vld [vmem:[%s488 + $0x1c] sm:$0xf]
        %v497 = vld [vmem:[%s488 + $0x20] sm:$0xf]
        %v498 = vld [vmem:[%s488 + $0x24] sm:$0xf]
        %v499 = vld [vmem:[%s488 + $0x28] sm:$0xf]
        %v500 = vld [vmem:[%s488 + $0x2c] sm:$0xf]
        %v501 = vld [vmem:[%s488 + $0x30] sm:$0xf]
        %v502 = vld [vmem:[%s488 + $0x34] sm:$0xf]
        %v503 = vld [vmem:[%s488 + $0x38] sm:$0xf]
        %v504 = vld [vmem:[%s488 + $0x3c] sm:$0xf]
        %s505 = scalar_lea.vmem [#allocation8], 128
        %v506 = vld [vmem:[%s505] sm:$0xf]
        %v507 = vld [vmem:[%s505 + $0x4] sm:$0xf]
        %v508 = vld [vmem:[%s505 + $0x8] sm:$0xf]
        %v509 = vld [vmem:[%s505 + $0xc] sm:$0xf]
        %v510 = vld [vmem:[%s505 + $0x10] sm:$0xf]
        %v511 = vld [vmem:[%s505 + $0x14] sm:$0xf]
        %v512 = vld [vmem:[%s505 + $0x18] sm:$0xf]
        %v513 = vld [vmem:[%s505 + $0x1c] sm:$0xf]
        %v514 = vld [vmem:[%s505 + $0x20] sm:$0xf]
        %v515 = vld [vmem:[%s505 + $0x24] sm:$0xf]
        %v516 = vld [vmem:[%s505 + $0x28] sm:$0xf]
        %v517 = vld [vmem:[%s505 + $0x2c] sm:$0xf]
        %v518 = vld [vmem:[%s505 + $0x30] sm:$0xf]
        %v519 = vld [vmem:[%s505 + $0x34] sm:$0xf]
        %v520 = vld [vmem:[%s505 + $0x38] sm:$0xf]
        %v521 = vld [vmem:[%s505 + $0x3c] sm:$0xf]
        %v522 = vld [vmem:[#allocation10] sm:$0xff]
        %v523 = vld [vmem:[#allocation10 + $0x8] sm:$0xf]
        %v524 = vld [vmem:[#allocation10 + $0xc] sm:$0xff]
        %v525 = vld [vmem:[#allocation10 + $0x14] sm:$0xf]
        %v526 = vld [vmem:[#allocation10 + $0x18] sm:$0xff]
        %v527 = vld [vmem:[#allocation10 + $0x20] sm:$0xf]
        %v528 = vld [vmem:[#allocation10 + $0x24] sm:$0xff]
        %v529 = vld [vmem:[#allocation10 + $0x2c] sm:$0xf]
        %v530 = vld [vmem:[#allocation10 + $0x30] sm:$0xff]
        %v531 = vld [vmem:[#allocation10 + $0x38] sm:$0xf]
        %v532 = vld [vmem:[#allocation10 + $0x3c] sm:$0xff]
        %v533 = vld [vmem:[#allocation10 + $0x44] sm:$0xf]
        %v534 = vld [vmem:[#allocation10 + $0x48] sm:$0xff]
        %v535 = vld [vmem:[#allocation10 + $0x50] sm:$0xf]
        %v536 = vld [vmem:[#allocation10 + $0x54] sm:$0xff]
        %v537 = vld [vmem:[#allocation10 + $0x5c] sm:$0xf]
        %v538 = vld [vmem:[#allocation10 + $0x60] sm:$0xff]
        %v539 = vld [vmem:[#allocation10 + $0x68] sm:$0xf]
        %v540 = vld [vmem:[#allocation10 + $0x6c] sm:$0xff]
        %v541 = vld [vmem:[#allocation10 + $0x74] sm:$0xf]
        %v542 = vld [vmem:[#allocation10 + $0x78] sm:$0xff]
        %v543 = vld [vmem:[#allocation10 + $0x80] sm:$0xf]
        %v544 = vld [vmem:[#allocation10 + $0x84] sm:$0xff]
        %v545 = vld [vmem:[#allocation10 + $0x8c] sm:$0xf]
        %v546 = vld [vmem:[#allocation10 + $0x90] sm:$0xff]
        %v547 = vld [vmem:[#allocation10 + $0x98] sm:$0xf]
        %v548 = vld [vmem:[#allocation10 + $0x9c] sm:$0xff]
        %v549 = vld [vmem:[#allocation10 + $0xa4] sm:$0xf]
        %v550 = vld [vmem:[#allocation10 + $0xa8] sm:$0xff]
        %v551 = vld [vmem:[#allocation10 + $0xb0] sm:$0xf]
        %v552 = vld [vmem:[#allocation10 + $0xb4] sm:$0xff]
        %v553 = vld [vmem:[#allocation10 + $0xbc] sm:$0xf]
        %s554 = scalar_lea.vmem [#allocation10], 192
        %v555 = vld [vmem:[%s554] sm:$0xff]
        %v556 = vld [vmem:[%s554 + $0x8] sm:$0xf]
        %v557 = vld [vmem:[%s554 + $0xc] sm:$0xff]
        %v558 = vld [vmem:[%s554 + $0x14] sm:$0xf]
        %v559 = vld [vmem:[%s554 + $0x18] sm:$0xff]
        %v560 = vld [vmem:[%s554 + $0x20] sm:$0xf]
        %v561 = vld [vmem:[%s554 + $0x24] sm:$0xff]
        %v562 = vld [vmem:[%s554 + $0x2c] sm:$0xf]
        %v563 = vld [vmem:[%s554 + $0x30] sm:$0xff]
        %v564 = vld [vmem:[%s554 + $0x38] sm:$0xf]
        %v565 = vld [vmem:[%s554 + $0x3c] sm:$0xff]
        %v566 = vld [vmem:[%s554 + $0x44] sm:$0xf]
        %v567 = vld [vmem:[%s554 + $0x48] sm:$0xff]
        %v568 = vld [vmem:[%s554 + $0x50] sm:$0xf]
        %v569 = vld [vmem:[%s554 + $0x54] sm:$0xff]
        %v570 = vld [vmem:[%s554 + $0x5c] sm:$0xf]
        %v571 = vld [vmem:[%s554 + $0x60] sm:$0xff]
        %v572 = vld [vmem:[%s554 + $0x68] sm:$0xf]
        %v573 = vld [vmem:[%s554 + $0x6c] sm:$0xff]
        %v574 = vld [vmem:[%s554 + $0x74] sm:$0xf]
        %v575 = vld [vmem:[%s554 + $0x78] sm:$0xff]
        %v576 = vld [vmem:[%s554 + $0x80] sm:$0xf]
        %v577 = vld [vmem:[%s554 + $0x84] sm:$0xff]
        %v578 = vld [vmem:[%s554 + $0x8c] sm:$0xf]
        %v579 = vld [vmem:[%s554 + $0x90] sm:$0xff]
        %v580 = vld [vmem:[%s554 + $0x98] sm:$0xf]
        %v581 = vld [vmem:[%s554 + $0x9c] sm:$0xff]
        %v582 = vld [vmem:[%s554 + $0xa4] sm:$0xf]
        %v583 = vld [vmem:[%s554 + $0xa8] sm:$0xff]
        %v584 = vld [vmem:[%s554 + $0xb0] sm:$0xf]
        %v585 = vld [vmem:[%s554 + $0xb4] sm:$0xff]
        %v586 = vld [vmem:[%s554 + $0xbc] sm:$0xf]
        %v587 = vld [vmem:[#allocation11] sm:$0xf]
        %v588 = vld [vmem:[#allocation11 + $0x4] sm:$0xf]
        %v589 = vld [vmem:[#allocation11 + $0x8] sm:$0xf]
        %v590 = vld [vmem:[#allocation11 + $0xc] sm:$0xf]
        %v591 = vld [vmem:[#allocation11 + $0x10] sm:$0xf]
        %v592 = vld [vmem:[#allocation11 + $0x14] sm:$0xf]
        %v593 = vld [vmem:[#allocation11 + $0x18] sm:$0xf]
        %v594 = vld [vmem:[#allocation11 + $0x1c] sm:$0xf]
        %v595 = vld [vmem:[#allocation11 + $0x20] sm:$0xf]
        %v596 = vld [vmem:[#allocation11 + $0x24] sm:$0xf]
        %v597 = vld [vmem:[#allocation11 + $0x28] sm:$0xf]
        %v598 = vld [vmem:[#allocation11 + $0x2c] sm:$0xf]
        %v599 = vld [vmem:[#allocation11 + $0x30] sm:$0xf]
        %v600 = vld [vmem:[#allocation11 + $0x34] sm:$0xf]
        %v601 = vld [vmem:[#allocation11 + $0x38] sm:$0xf]
        %v602 = vld [vmem:[#allocation11 + $0x3c] sm:$0xf]
        %v603 = vld [vmem:[#allocation13] sm:$0xf]
        %v604 = vld [vmem:[#allocation13 + $0x4] sm:$0xf]
        %v605 = vld [vmem:[#allocation13 + $0x8] sm:$0xf]
        %v606 = vld [vmem:[#allocation13 + $0xc] sm:$0xf]
        %v607 = vld [vmem:[#allocation13 + $0x10] sm:$0xf]
        %v608 = vld [vmem:[#allocation13 + $0x14] sm:$0xf]
        %v609 = vld [vmem:[#allocation13 + $0x18] sm:$0xf]
        %v610 = vld [vmem:[#allocation13 + $0x1c] sm:$0xf]
        %v611 = vld [vmem:[#allocation13 + $0x20] sm:$0xf]
        %v612 = vld [vmem:[#allocation13 + $0x24] sm:$0xf]
        %v613 = vld [vmem:[#allocation13 + $0x28] sm:$0xf]
        %v614 = vld [vmem:[#allocation13 + $0x2c] sm:$0xf]
        %v615 = vld [vmem:[#allocation13 + $0x30] sm:$0xf]
        %v616 = vld [vmem:[#allocation13 + $0x34] sm:$0xf]
        %v617 = vld [vmem:[#allocation13 + $0x38] sm:$0xf]
        %v618 = vld [vmem:[#allocation13 + $0x3c] sm:$0xf]
        %v619 = vlaneseq
        %v620 = vshrl.u32 %v619, 7
        %v621 = vsub.s32 0, %v620
        %v622 = vrot.slane %v467, %v621
        %v623 = vld [vmem:[%s3] sm:$0x7]
        %v625 = vlaneseq
        %v626 = vshrl.u32 %v625, 7
        %v627 = vsub.s32 0, %v626
        %v628 = vrot.slane %v623, %v627
        %v629 = vlaneseq
        %v630 = vshrl.u32 %v629, 7
        %v631 = vsub.s32 1, %v630
        %v632 = vrot.slane %v623, %v631
        %v633 = vlaneseq
        %v634 = vshrl.u32 %v633, 7
        %v635 = vsub.s32 2, %v634
        %v636 = vrot.slane %v623, %v635
        %v640 = vlaneseq
        %v641 = vshrl.u32 %v640, 7
        %v642 = vsub.s32 0, %v641
        %v643 = vrot.slane %v471, %v642
        %v644 = vld [vmem:[%s4] sm:$0x1]
        %v646 = vlaneseq
        %v647 = vshrl.u32 %v646, 7
        %v648 = vsub.s32 0, %v647
        %v649 = vrot.slane %v644, %v648
        %v651 = vlaneseq
        %v652 = vshrl.u32 %v651, 7
        %v653 = vsub.s32 0, %v652
        %v654 = vrot.slane %v470, %v653
        %v655 = vld [vmem:[%s391] sm:$0xf]
        %v656 = vld [vmem:[%s391 + $0x4] sm:$0xf]
        %v657 = vunpack.c.l.bf16 %v655
        %v658 = vunpack.c.l.bf16 %v656
        %659 = vadd.xlane.f32.xlu0 %v657
        %v660 = vpop.xlane.xlu0 %659
        %661 = vadd.xlane.f32.xlu0 %v658
        %v662 = vpop.xlane.xlu0 %661
        %v663 = vmul.f32 %v660, 0.03125
        %v664 = vmul.f32 %v662, 0.03125
        %v665 = vmul.f32 %v657, %v657
        %v666 = vmul.f32 %v658, %v658
        %667 = vadd.xlane.f32.xlu0 %v665
        %v668 = vpop.xlane.xlu0 %667
        %669 = vadd.xlane.f32.xlu0 %v666
        %v670 = vpop.xlane.xlu0 %669
        %v671 = vmul.f32 %v668, 0.03125
        %v672 = vmul.f32 %v670, 0.03125
        %v673 = vsub.f32 %v657, %v663
        %v674 = vsub.f32 %v658, %v664
        %v675 = vmul.f32 %v663, %v663
        %v676 = vmul.f32 %v664, %v664
        %v677 = vsub.f32 %v671, %v675
        %v678 = vsub.f32 %v672, %v676
        %v679 = vadd.f32 %v677, 1e-05
        %v680 = vadd.f32 %v678, 1e-05
        %v681 = vrsqrt.pop %v679
        %v682 = vrsqrt.pop %v680
        %v683 = vmul.f32 %v673, %v681
        %v684 = vmul.f32 %v674, %v682
        %v685 = vlaneseq
        %v686 = vshrl.u32 %v685, 7
        %v687 = vsub.s32 0, %v686
        %v688 = vrot.slane %v461, %v687
        %v689 = vmul.f32 %v683, %v688
        %v690 = vmul.f32 %v684, %v688
        %v691 = vlaneseq
        %v692 = vshrl.u32 %v691, 7
        %v693 = vsub.s32 0, %v692
        %v694 = vrot.slane %v462, %v693
        %v695 = vadd.f32 %v689, %v694
        %v696 = vadd.f32 %v690, %v694
        %v697 = vpack.c.bf16 %v696, %v695
        %v698 = vlaneseq
        %v699 = vshrl.u32 %v698, 7
        %v700 = vsub.s32 0, %v699
        %v701 = vrot.slane %v468, %v700
        %v718 = vunpack.c.l.b16 %v489
        %v719 = vunpack.c.l.b16 %v490
        %v720 = vunpack.c.l.b16 %v491
        %v721 = vunpack.c.l.b16 %v492
        %v722 = vunpack.c.l.b16 %v493
        %v723 = vunpack.c.l.b16 %v494
        %v724 = vunpack.c.l.b16 %v495
        %v725 = vunpack.c.l.b16 %v496
        %v726 = vunpack.c.l.b16 %v497
        %v727 = vunpack.c.l.b16 %v498
        %v728 = vunpack.c.l.b16 %v499
        %v729 = vunpack.c.l.b16 %v500
        %v730 = vunpack.c.l.b16 %v501
        %v731 = vunpack.c.l.b16 %v502
        %v732 = vunpack.c.l.b16 %v503
        %v733 = vunpack.c.l.b16 %v504
        %v734 = vpack.c.b16 %v719, %v718
        %v735 = vpack.c.b16 %v721, %v720
        %v736 = vpack.c.b16 %v723, %v722
        %v737 = vpack.c.b16 %v725, %v724
        %v738 = vpack.c.b16 %v727, %v726
        %v739 = vpack.c.b16 %v729, %v728
        %v740 = vpack.c.b16 %v731, %v730
        %v741 = vpack.c.b16 %v733, %v732
        %750 = vmatprep.subr.bf16.mxu0 0
        %751 = vmatpush1.bf16.msra.mxu0 %v734
        %752 = vmatprep.subr.bf16.mxu0 0
        %753 = vmatpush1.bf16.msra.mxu0 %v735
        %754 = vmatprep.subr.bf16.mxu0 0
        %755 = vmatpush1.bf16.msra.mxu0 %v736
        %756 = vmatprep.subr.bf16.mxu0 0
        %757 = vmatpush1.bf16.msra.mxu0 %v737
        %758 = vmatprep.subr.bf16.mxu0 0
        %759 = vmatpush1.bf16.msra.mxu0 %v738
        %760 = vmatprep.subr.bf16.mxu0 0
        %761 = vmatpush1.bf16.msra.mxu0 %v739
        %762 = vmatprep.subr.bf16.mxu0 0
        %763 = vmatpush1.bf16.msra.mxu0 %v740
        %764 = vmatprep.subr.bf16.mxu0 0
        %765 = vmatpush1.bf16.msra.mxu0 %v741
        %766 = vmatprep.subr.bf16.mxu0 0
        %767 = vmatpush1.bf16.msra.mxu0 0
        %768 = vmatprep.subr.bf16.mxu0 0
        %769 = vmatpush1.bf16.msra.mxu0 0
        %770 = vmatprep.subr.bf16.mxu0 0
        %771 = vmatpush1.bf16.msra.mxu0 0
        %772 = vmatprep.subr.bf16.mxu0 0
        %773 = vmatpush1.bf16.msra.mxu0 0
        %774 = vmatprep.subr.bf16.mxu0 0
        %775 = vmatpush1.bf16.msra.mxu0 0
        %776 = vmatprep.subr.bf16.mxu0 0
        %777 = vmatpush1.bf16.msra.mxu0 0
        %778 = vmatprep.subr.bf16.mxu0 0
        %779 = vmatpush1.bf16.msra.mxu0 0
        %780 = vmatprep.subr.bf16.mxu0 0
        %781 = vmatpush1.bf16.msra.mxu0 0
        %782 = vmatprep.mubr.bf16.mxu0 0
        %783 = vmatmul.mubr.bf16.gmra.mrb[0].mxu0 %v697
        %v784 = vpop.f32.mrb[0].mxu0
        %v785 = vadd.f32 %v701, %v784
        %v786 = vpop.f32.mrb[0].mxu0
        %v787 = vpop.f32.mrb[0].mxu0
        %v788 = vadd.f32 %v701, %v787
        %v789 = vpop.f32.mrb[0].mxu0
        %790 = vdwg.mxu0
        %v791 = vpack.c.bf16 %v788, %v785
        %v792 = vlaneseq
        %v793 = vshrl.u32 %v792, 7
        %v794 = vsub.s32 0, %v793
        %v795 = vrot.slane %v469, %v794
        %v812 = vunpack.c.l.b16 %v506
        %v813 = vunpack.c.l.b16 %v507
        %v814 = vunpack.c.l.b16 %v508
        %v815 = vunpack.c.l.b16 %v509
        %v816 = vunpack.c.l.b16 %v510
        %v817 = vunpack.c.l.b16 %v511
        %v818 = vunpack.c.l.b16 %v512
        %v819 = vunpack.c.l.b16 %v513
        %v820 = vunpack.c.l.b16 %v514
        %v821 = vunpack.c.l.b16 %v515
        %v822 = vunpack.c.l.b16 %v516
        %v823 = vunpack.c.l.b16 %v517
        %v824 = vunpack.c.l.b16 %v518
        %v825 = vunpack.c.l.b16 %v519
        %v826 = vunpack.c.l.b16 %v520
        %v827 = vunpack.c.l.b16 %v521
        %v828 = vpack.c.b16 %v813, %v812
        %v829 = vpack.c.b16 %v815, %v814
        %v830 = vpack.c.b16 %v817, %v816
        %v831 = vpack.c.b16 %v819, %v818
        %v832 = vpack.c.b16 %v821, %v820
        %v833 = vpack.c.b16 %v823, %v822
        %v834 = vpack.c.b16 %v825, %v824
        %v835 = vpack.c.b16 %v827, %v826
        %844 = vmatprep.subr.bf16.mxu0 0
        %845 = vmatpush1.bf16.msra.mxu0 %v828
        %846 = vmatprep.subr.bf16.mxu0 0
        %847 = vmatpush1.bf16.msra.mxu0 %v829
        %848 = vmatprep.subr.bf16.mxu0 0
        %849 = vmatpush1.bf16.msra.mxu0 %v830
        %850 = vmatprep.subr.bf16.mxu0 0
        %851 = vmatpush1.bf16.msra.mxu0 %v831
        %852 = vmatprep.subr.bf16.mxu0 0
        %853 = vmatpush1.bf16.msra.mxu0 %v832
        %854 = vmatprep.subr.bf16.mxu0 0
        %855 = vmatpush1.bf16.msra.mxu0 %v833
        %856 = vmatprep.subr.bf16.mxu0 0
        %857 = vmatpush1.bf16.msra.mxu0 %v834
        %858 = vmatprep.subr.bf16.mxu0 0
        %859 = vmatpush1.bf16.msra.mxu0 %v835
        %860 = vmatprep.subr.bf16.mxu0 0
        %861 = vmatpush1.bf16.msra.mxu0 0
        %862 = vmatprep.subr.bf16.mxu0 0
        %863 = vmatpush1.bf16.msra.mxu0 0
        %864 = vmatprep.subr.bf16.mxu0 0
        %865 = vmatpush1.bf16.msra.mxu0 0
        %866 = vmatprep.subr.bf16.mxu0 0
        %867 = vmatpush1.bf16.msra.mxu0 0
        %868 = vmatprep.subr.bf16.mxu0 0
        %869 = vmatpush1.bf16.msra.mxu0 0
        %870 = vmatprep.subr.bf16.mxu0 0
        %871 = vmatpush1.bf16.msra.mxu0 0
        %872 = vmatprep.subr.bf16.mxu0 0
        %873 = vmatpush1.bf16.msra.mxu0 0
        %874 = vmatprep.subr.bf16.mxu0 0
        %875 = vmatpush1.bf16.msra.mxu0 0
        %876 = vmatprep.mubr.bf16.mxu0 0
        %877 = vmatmul.mubr.bf16.gmra.mrb[0].mxu0 %v697
        %v878 = vpop.f32.mrb[0].mxu0
        %v879 = vadd.f32 %v795, %v878
        %v880 = vpop.f32.mrb[0].mxu0
        %v881 = vpop.f32.mrb[0].mxu0
        %v882 = vadd.f32 %v795, %v881
        %v883 = vpop.f32.mrb[0].mxu0
        %884 = vdwg.mxu0
        %v885 = vpack.c.bf16 %v882, %v879
        %v886 = vld [vmem:[%s400] sm:$0xf]
        loop: start=0, step=1, limit=7
        $region85: #{tpu_custom_call.1} parent=55 // loop_pre_header
          _
        $region86: #{tpu_custom_call.1} parent=55 // loop_header
          %s888 = sphi 0, %s892
          %p889 = scmp.ge.s32.totalorder %s888, 7
          %v893 = vphi %v886, %v1769
        $region87: #{tpu_custom_call.1} parent=55 // loop_header_branch
          %891 = sbr.rel (%p889) target = $region91
        $region88: #{tpu_custom_call.1} parent=55 // loop_body
          %vm894 = vcmask 1043456
          %v895 = vsel %vm894, %v893, 0.0
          %896 = vadd.xlane.f32.xlu0 %v895
          %v897 = vpop.xlane.xlu0 %896
          %v898 = vmul.f32 %v897, 0.03125
          %v899 = vmul.f32 %v893, %v893
          %v900 = vsel %vm894, %v899, 0.0
          %901 = vadd.xlane.f32.xlu0 %v900
          %v902 = vpop.xlane.xlu0 %901
          %v903 = vmul.f32 %v902, 0.03125
          %v904 = vsub.f32 %v893, %v898
          %v905 = vmul.f32 %v898, %v898
          %v906 = vsub.f32 %v903, %v905
          %v907 = vadd.f32 %v906, 1e-05
          %v908 = vrsqrt.pop %v907
          %v909 = vmul.f32 %v904, %v908
          %v910 = vlaneseq
          %v911 = vshrl.u32 %v910, 7
          %v912 = vsub.s32 0, %v911
          %v913 = vrot.slane %v463, %v912
          %v914 = vmul.f32 %v909, %v913
          %v915 = vlaneseq
          %v916 = vshrl.u32 %v915, 7
          %v917 = vsub.s32 0, %v916
          %v918 = vrot.slane %v464, %v917
          %v919 = vadd.f32 %v914, %v918
          %v920 = vpack.c.bf16 %v919, %v919
          %v937 = vunpack.c.l.b16 %v472
          %v938 = vunpack.c.l.b16 %v473
          %v939 = vunpack.c.l.b16 %v474
          %v940 = vunpack.c.l.b16 %v475
          %v941 = vunpack.c.l.b16 %v476
          %v942 = vunpack.c.l.b16 %v477
          %v943 = vunpack.c.l.b16 %v478
          %v944 = vunpack.c.l.b16 %v479
          %v945 = vunpack.c.l.b16 %v480
          %v946 = vunpack.c.l.b16 %v481
          %v947 = vunpack.c.l.b16 %v482
          %v948 = vunpack.c.l.b16 %v483
          %v949 = vunpack.c.l.b16 %v484
          %v950 = vunpack.c.l.b16 %v485
          %v951 = vunpack.c.l.b16 %v486
          %v952 = vunpack.c.l.b16 %v487
          %v953 = vpack.c.b16 %v938, %v937
          %v954 = vpack.c.b16 %v940, %v939
          %v955 = vpack.c.b16 %v942, %v941
          %v956 = vpack.c.b16 %v944, %v943
          %v957 = vpack.c.b16 %v946, %v945
          %v958 = vpack.c.b16 %v948, %v947
          %v959 = vpack.c.b16 %v950, %v949
          %v960 = vpack.c.b16 %v952, %v951
          %969 = vmatprep.subr.bf16.mxu0 0
          %970 = vmatpush1.bf16.msra.mxu0 %v953
          %971 = vmatprep.subr.bf16.mxu0 0
          %972 = vmatpush1.bf16.msra.mxu0 %v954
          %973 = vmatprep.subr.bf16.mxu0 0
          %974 = vmatpush1.bf16.msra.mxu0 %v955
          %975 = vmatprep.subr.bf16.mxu0 0
          %976 = vmatpush1.bf16.msra.mxu0 %v956
          %977 = vmatprep.subr.bf16.mxu0 0
          %978 = vmatpush1.bf16.msra.mxu0 %v957
          %979 = vmatprep.subr.bf16.mxu0 0
          %980 = vmatpush1.bf16.msra.mxu0 %v958
          %981 = vmatprep.subr.bf16.mxu0 0
          %982 = vmatpush1.bf16.msra.mxu0 %v959
          %983 = vmatprep.subr.bf16.mxu0 0
          %984 = vmatpush1.bf16.msra.mxu0 %v960
          %985 = vmatprep.subr.bf16.mxu0 0
          %986 = vmatpush1.bf16.msra.mxu0 0
          %987 = vmatprep.subr.bf16.mxu0 0
          %988 = vmatpush1.bf16.msra.mxu0 0
          %989 = vmatprep.subr.bf16.mxu0 0
          %990 = vmatpush1.bf16.msra.mxu0 0
          %991 = vmatprep.subr.bf16.mxu0 0
          %992 = vmatpush1.bf16.msra.mxu0 0
          %993 = vmatprep.subr.bf16.mxu0 0
          %994 = vmatpush1.bf16.msra.mxu0 0
          %995 = vmatprep.subr.bf16.mxu0 0
          %996 = vmatpush1.bf16.msra.mxu0 0
          %997 = vmatprep.subr.bf16.mxu0 0
          %998 = vmatpush1.bf16.msra.mxu0 0
          %999 = vmatprep.subr.bf16.mxu0 0
          %1000 = vmatpush1.bf16.msra.mxu0 0
          %1001 = vmatprep.mubr.bf16.mxu0 0
          %1002 = vmatmul.mubr.bf16.gmra.mrb[0].mxu0 %v920
          %v1003 = vpop.f32.mrb[0].mxu0
          %v1004 = vadd.f32 %v622, %v1003
          %v1005 = vpop.f32.mrb[0].mxu0
          %v1006 = vpop.f32.mrb[0].mxu0
          %v1007 = vpop.f32.mrb[0].mxu0
          %1008 = vdwg.mxu0
          %v1009 = vmul.f32 %v1004, 0.17677669
          %v1010 = vpack.c.bf16 %v1009, %v1009
          %1011 = vmatprep.subr.bf16.mxu0 0
          %1012 = vmatpush1.bf16.xpose.msra.mxu0 %v791
          %1013 = vmatprep.subr.bf16.mxu0 0
          %1014 = vmatpush1.bf16.xpose.msra.mxu0 0
          %1015 = vmatprep.subr.bf16.mxu0 0
          %1016 = vmatpush1.bf16.xpose.msra.mxu0 0
          %1017 = vmatprep.subr.bf16.mxu0 0
          %1018 = vmatpush1.bf16.xpose.msra.mxu0 0
          %1019 = vmatprep.subr.bf16.mxu0 0
          %1020 = vmatpush1.bf16.xpose.msra.mxu0 0
          %1021 = vmatprep.subr.bf16.mxu0 0
          %1022 = vmatpush1.bf16.xpose.msra.mxu0 0
          %1023 = vmatprep.subr.bf16.mxu0 0
          %1024 = vmatpush1.bf16.xpose.msra.mxu0 0
          %1025 = vmatprep.subr.bf16.mxu0 0
          %1026 = vmatpush1.bf16.xpose.msra.mxu0 0
          %1027 = vmatprep.subr.bf16.mxu0 0
          %1028 = vmatpush1.bf16.xpose.msra.mxu0 0
          %1029 = vmatprep.subr.bf16.mxu0 0
          %1030 = vmatpush1.bf16.xpose.msra.mxu0 0
          %1031 = vmatprep.subr.bf16.mxu0 0
          %1032 = vmatpush1.bf16.xpose.msra.mxu0 0
          %1033 = vmatprep.subr.bf16.mxu0 0
          %1034 = vmatpush1.bf16.xpose.msra.mxu0 0
          %1035 = vmatprep.subr.bf16.mxu0 0
          %1036 = vmatpush1.bf16.xpose.msra.mxu0 0
          %1037 = vmatprep.subr.bf16.mxu0 0
          %1038 = vmatpush1.bf16.xpose.msra.mxu0 0
          %1039 = vmatprep.subr.bf16.mxu0 0
          %1040 = vmatpush1.bf16.xpose.msra.mxu0 0
          %1041 = vmatprep.subr.bf16.mxu0 0
          %1042 = vmatpush1.bf16.xpose.msra.mxu0 0
          %1043 = vmatprep.mubr.bf16.mxu0 0
          %1044 = vmatmul.mubr.bf16.gmra.mrb[0].mxu0 %v1010
          %v1045 = vpop.f32.mrb[0].mxu0
          %v1046 = vadd.f32 0.0, %v1045
          %v1047 = vpop.f32.mrb[0].mxu0
          %v1048 = vpop.f32.mrb[0].mxu0
          %v1049 = vpop.f32.mrb[0].mxu0
          %1050 = vdwg.mxu0
          %vm1051 = vcmask 125952
          %v1052 = vsel %vm1051, %v1046, -inf
          %v1053 = vrot.slane %v1052, 4
          %v1054 = vmax.f32 %v1052, %v1053
          %v1055 = vrot.slane %v1054, 2
          %v1056 = vmax.f32 %v1054, %v1055
          %v1057 = vrot.slane %v1056, 1
          %v1058 = vmax.f32 %v1056, %v1057
          %v1059 = vsub.f32 %v1046, %v1058
          %v1060 = vmul.f32 %v1059, 1.442695
          %v1061 = vpow.pop %v1060
          %v1062 = vsel %vm1051, %v1061, 0.0
          %v1063 = vrot.slane %v1062, 4
          %v1064 = vadd.f32 %v1062, %v1063
          %v1065 = vrot.slane %v1064, 2
          %v1066 = vadd.f32 %v1064, %v1065
          %v1067 = vrot.slane %v1066, 1
          %v1068 = vadd.f32 %v1066, %v1067
          %v1069 = vrcp.pop %v1068
          %v1070 = vmul.f32 %v1061, %v1069
          %v1071 = vadd.f32 %v1070, 1e-08
          %v1072 = vsel %vm1051, %v1071, 0.0
          %1073 = vadd.xlane.f32.xlu0 %v1072
          %v1074 = vpop.xlane.xlu0 %1073
          %v1075 = vrcp.pop %v1074
          %v1076 = vmul.f32 %v1071, %v1075
          %v1077 = vpack.c.bf16 %v1076, %v1076
          %vm1078 = vcmask 130048
          %v1080 = vsel %vm1078, %v1077, 0
          %1082 = vmatprep.subr.bf16.mxu0 0
          %1083 = vmatpush1.bf16.msra.mxu0 %v885
          %1084 = vmatprep.subr.bf16.mxu0 0
          %1085 = vmatpush1.bf16.msra.mxu0 0
          %1086 = vmatprep.subr.bf16.mxu0 0
          %1087 = vmatpush1.bf16.msra.mxu0 0
          %1088 = vmatprep.subr.bf16.mxu0 0
          %1089 = vmatpush1.bf16.msra.mxu0 0
          %1090 = vmatprep.subr.bf16.mxu0 0
          %1091 = vmatpush1.bf16.msra.mxu0 0
          %1092 = vmatprep.subr.bf16.mxu0 0
          %1093 = vmatpush1.bf16.msra.mxu0 0
          %1094 = vmatprep.subr.bf16.mxu0 0
          %1095 = vmatpush1.bf16.msra.mxu0 0
          %1096 = vmatprep.subr.bf16.mxu0 0
          %1097 = vmatpush1.bf16.msra.mxu0 0
          %1098 = vmatprep.subr.bf16.mxu0 0
          %1099 = vmatpush1.bf16.msra.mxu0 0
          %1100 = vmatprep.subr.bf16.mxu0 0
          %1101 = vmatpush1.bf16.msra.mxu0 0
          %1102 = vmatprep.subr.bf16.mxu0 0
          %1103 = vmatpush1.bf16.msra.mxu0 0
          %1104 = vmatprep.subr.bf16.mxu0 0
          %1105 = vmatpush1.bf16.msra.mxu0 0
          %1106 = vmatprep.subr.bf16.mxu0 0
          %1107 = vmatpush1.bf16.msra.mxu0 0
          %1108 = vmatprep.subr.bf16.mxu0 0
          %1109 = vmatpush1.bf16.msra.mxu0 0
          %1110 = vmatprep.subr.bf16.mxu0 0
          %1111 = vmatpush1.bf16.msra.mxu0 0
          %1112 = vmatprep.subr.bf16.mxu0 0
          %1113 = vmatpush1.bf16.msra.mxu0 0
          %1114 = vmatprep.mubr.bf16.mxu0 0
          %1115 = vmatmul.mubr.bf16.gmra.mrb[0].mxu0 %v1080
          %v1116 = vpop.f32.mrb[0].mxu0
          %v1117 = vadd.f32 0.0, %v1116
          %v1118 = vpop.f32.mrb[0].mxu0
          %v1119 = vpop.f32.mrb[0].mxu0
          %v1120 = vpop.f32.mrb[0].mxu0
          %1121 = vdwg.mxu0
          %v1122 = vpack.c.bf16 %v1117, %v1117
          %v1123 = vpack.c.bf16 %v893, %v893
          %v1156 = vunpack.c.l.b16 %v522
          %v1157 = vunpack.c.h.b16 %v522
          %v1158 = vunpack.c.l.b16 %v523
          %v1159 = vunpack.c.l.b16 %v524
          %v1160 = vunpack.c.h.b16 %v524
          %v1161 = vunpack.c.l.b16 %v525
          %v1162 = vunpack.c.l.b16 %v526
          %v1163 = vunpack.c.h.b16 %v526
          %v1164 = vunpack.c.l.b16 %v527
          %v1165 = vunpack.c.l.b16 %v528
          %v1166 = vunpack.c.h.b16 %v528
          %v1167 = vunpack.c.l.b16 %v529
          %v1168 = vunpack.c.l.b16 %v530
          %v1169 = vunpack.c.h.b16 %v530
          %v1170 = vunpack.c.l.b16 %v531
          %v1171 = vunpack.c.l.b16 %v532
          %v1172 = vunpack.c.h.b16 %v532
          %v1173 = vunpack.c.l.b16 %v533
          %v1174 = vunpack.c.l.b16 %v534
          %v1175 = vunpack.c.h.b16 %v534
          %v1176 = vunpack.c.l.b16 %v535
          %v1177 = vunpack.c.l.b16 %v536
          %v1178 = vunpack.c.h.b16 %v536
          %v1179 = vunpack.c.l.b16 %v537
          %v1180 = vunpack.c.l.b16 %v538
          %v1181 = vunpack.c.h.b16 %v538
          %v1182 = vunpack.c.l.b16 %v539
          %v1183 = vunpack.c.l.b16 %v540
          %v1184 = vunpack.c.h.b16 %v540
          %v1185 = vunpack.c.l.b16 %v541
          %v1186 = vunpack.c.l.b16 %v542
          %v1187 = vunpack.c.h.b16 %v542
          %v1188 = vunpack.c.l.b16 %v543
          %v1189 = vunpack.c.l.b16 %v544
          %v1190 = vunpack.c.h.b16 %v544
          %v1191 = vunpack.c.l.b16 %v545
          %v1192 = vunpack.c.l.b16 %v546
          %v1193 = vunpack.c.h.b16 %v546
          %v1194 = vunpack.c.l.b16 %v547
          %v1195 = vunpack.c.l.b16 %v548
          %v1196 = vunpack.c.h.b16 %v548
          %v1197 = vunpack.c.l.b16 %v549
          %v1198 = vunpack.c.l.b16 %v550
          %v1199 = vunpack.c.h.b16 %v550
          %v1200 = vunpack.c.l.b16 %v551
          %v1201 = vunpack.c.l.b16 %v552
          %v1202 = vunpack.c.h.b16 %v552
          %v1203 = vunpack.c.l.b16 %v553
          %v1204 = vpack.c.b16 %v1159, %v1156
          %v1205 = vpack.c.b16 %v1160, %v1157
          %v1206 = vpack.c.b16 %v1161, %v1158
          %v1207 = vpack.c.b16 %v1165, %v1162
          %v1208 = vpack.c.b16 %v1166, %v1163
          %v1209 = vpack.c.b16 %v1167, %v1164
          %v1210 = vpack.c.b16 %v1171, %v1168
          %v1211 = vpack.c.b16 %v1172, %v1169
          %v1212 = vpack.c.b16 %v1173, %v1170
          %v1213 = vpack.c.b16 %v1177, %v1174
          %v1214 = vpack.c.b16 %v1178, %v1175
          %v1215 = vpack.c.b16 %v1179, %v1176
          %v1216 = vpack.c.b16 %v1183, %v1180
          %v1217 = vpack.c.b16 %v1184, %v1181
          %v1218 = vpack.c.b16 %v1185, %v1182
          %v1219 = vpack.c.b16 %v1189, %v1186
          %v1220 = vpack.c.b16 %v1190, %v1187
          %v1221 = vpack.c.b16 %v1191, %v1188
          %v1222 = vpack.c.b16 %v1195, %v1192
          %v1223 = vpack.c.b16 %v1196, %v1193
          %v1224 = vpack.c.b16 %v1197, %v1194
          %v1225 = vpack.c.b16 %v1201, %v1198
          %v1226 = vpack.c.b16 %v1202, %v1199
          %v1227 = vpack.c.b16 %v1203, %v1200
          %1252 = vmatprep.subr.bf16.mxu0 %v1205
          %1253 = vmatpush1.bf16.msra.mxu0 %v1204
          %1254 = vmatprep.subr.bf16.mxu0 %v1208
          %1255 = vmatpush1.bf16.msra.mxu0 %v1207
          %1256 = vmatprep.subr.bf16.mxu0 %v1211
          %1257 = vmatpush1.bf16.msra.mxu0 %v1210
          %1258 = vmatprep.subr.bf16.mxu0 %v1214
          %1259 = vmatpush1.bf16.msra.mxu0 %v1213
          %1260 = vmatprep.subr.bf16.mxu0 %v1217
          %1261 = vmatpush1.bf16.msra.mxu0 %v1216
          %1262 = vmatprep.subr.bf16.mxu0 %v1220
          %1263 = vmatpush1.bf16.msra.mxu0 %v1219
          %1264 = vmatprep.subr.bf16.mxu0 %v1223
          %1265 = vmatpush1.bf16.msra.mxu0 %v1222
          %1266 = vmatprep.subr.bf16.mxu0 %v1226
          %1267 = vmatpush1.bf16.msra.mxu0 %v1225
          %1268 = vmatprep.subr.bf16.mxu0 0
          %1269 = vmatpush1.bf16.msra.mxu0 0
          %1270 = vmatprep.subr.bf16.mxu0 0
          %1271 = vmatpush1.bf16.msra.mxu0 0
          %1272 = vmatprep.subr.bf16.mxu0 0
          %1273 = vmatpush1.bf16.msra.mxu0 0
          %1274 = vmatprep.subr.bf16.mxu0 0
          %1275 = vmatpush1.bf16.msra.mxu0 0
          %1276 = vmatprep.subr.bf16.mxu0 0
          %1277 = vmatpush1.bf16.msra.mxu0 0
          %1278 = vmatprep.subr.bf16.mxu0 0
          %1279 = vmatpush1.bf16.msra.mxu0 0
          %1280 = vmatprep.subr.bf16.mxu0 0
          %1281 = vmatpush1.bf16.msra.mxu0 0
          %1282 = vmatprep.subr.bf16.mxu0 0
          %1283 = vmatpush1.bf16.msra.mxu0 0
          %1284 = vmatprep.mubr.bf16.mxu0 0
          %1285 = vmatmul.mubr.bf16.gmra.mrb[0].mxu0 %v1122
          %v1286 = vpop.f32.mrb[0].mxu0
          %v1287 = vadd.f32 %v628, %v1286
          %v1288 = vpop.f32.mrb[0].mxu0
          %v1289 = vadd.f32 %v632, %v1288
          %v1290 = vpop.f32.mrb[0].mxu0
          %v1291 = vpop.f32.mrb[0].mxu0
          %1292 = vdwg.mxu0
          %1293 = vmatprep.subr.bf16.mxu0 0
          %1294 = vmatpush1.bf16.msra.mxu0 %v1206
          %1295 = vmatprep.subr.bf16.mxu0 0
          %1296 = vmatpush1.bf16.msra.mxu0 %v1209
          %1297 = vmatprep.subr.bf16.mxu0 0
          %1298 = vmatpush1.bf16.msra.mxu0 %v1212
          %1299 = vmatprep.subr.bf16.mxu0 0
          %1300 = vmatpush1.bf16.msra.mxu0 %v1215
          %1301 = vmatprep.subr.bf16.mxu0 0
          %1302 = vmatpush1.bf16.msra.mxu0 %v1218
          %1303 = vmatprep.subr.bf16.mxu0 0
          %1304 = vmatpush1.bf16.msra.mxu0 %v1221
          %1305 = vmatprep.subr.bf16.mxu0 0
          %1306 = vmatpush1.bf16.msra.mxu0 %v1224
          %1307 = vmatprep.subr.bf16.mxu0 0
          %1308 = vmatpush1.bf16.msra.mxu0 %v1227
          %1309 = vmatprep.subr.bf16.mxu0 0
          %1310 = vmatpush1.bf16.msra.mxu0 0
          %1311 = vmatprep.subr.bf16.mxu0 0
          %1312 = vmatpush1.bf16.msra.mxu0 0
          %1313 = vmatprep.subr.bf16.mxu0 0
          %1314 = vmatpush1.bf16.msra.mxu0 0
          %1315 = vmatprep.subr.bf16.mxu0 0
          %1316 = vmatpush1.bf16.msra.mxu0 0
          %1317 = vmatprep.subr.bf16.mxu0 0
          %1318 = vmatpush1.bf16.msra.mxu0 0
          %1319 = vmatprep.subr.bf16.mxu0 0
          %1320 = vmatpush1.bf16.msra.mxu0 0
          %1321 = vmatprep.subr.bf16.mxu0 0
          %1322 = vmatpush1.bf16.msra.mxu0 0
          %1323 = vmatprep.subr.bf16.mxu0 0
          %1324 = vmatpush1.bf16.msra.mxu0 0
          %1325 = vmatprep.mubr.bf16.mxu0 0
          %1326 = vmatmul.mubr.bf16.gmra.mrb[0].mxu0 %v1122
          %v1327 = vpop.f32.mrb[0].mxu0
          %v1328 = vadd.f32 %v636, %v1327
          %v1329 = vpop.f32.mrb[0].mxu0
          %v1330 = vpop.f32.mrb[0].mxu0
          %v1331 = vpop.f32.mrb[0].mxu0
          %1332 = vdwg.mxu0
          %v1365 = vunpack.c.l.b16 %v555
          %v1366 = vunpack.c.h.b16 %v555
          %v1367 = vunpack.c.l.b16 %v556
          %v1368 = vunpack.c.l.b16 %v557
          %v1369 = vunpack.c.h.b16 %v557
          %v1370 = vunpack.c.l.b16 %v558
          %v1371 = vunpack.c.l.b16 %v559
          %v1372 = vunpack.c.h.b16 %v559
          %v1373 = vunpack.c.l.b16 %v560
          %v1374 = vunpack.c.l.b16 %v561
          %v1375 = vunpack.c.h.b16 %v561
          %v1376 = vunpack.c.l.b16 %v562
          %v1377 = vunpack.c.l.b16 %v563
          %v1378 = vunpack.c.h.b16 %v563
          %v1379 = vunpack.c.l.b16 %v564
          %v1380 = vunpack.c.l.b16 %v565
          %v1381 = vunpack.c.h.b16 %v565
          %v1382 = vunpack.c.l.b16 %v566
          %v1383 = vunpack.c.l.b16 %v567
          %v1384 = vunpack.c.h.b16 %v567
          %v1385 = vunpack.c.l.b16 %v568
          %v1386 = vunpack.c.l.b16 %v569
          %v1387 = vunpack.c.h.b16 %v569
          %v1388 = vunpack.c.l.b16 %v570
          %v1389 = vunpack.c.l.b16 %v571
          %v1390 = vunpack.c.h.b16 %v571
          %v1391 = vunpack.c.l.b16 %v572
          %v1392 = vunpack.c.l.b16 %v573
          %v1393 = vunpack.c.h.b16 %v573
          %v1394 = vunpack.c.l.b16 %v574
          %v1395 = vunpack.c.l.b16 %v575
          %v1396 = vunpack.c.h.b16 %v575
          %v1397 = vunpack.c.l.b16 %v576
          %v1398 = vunpack.c.l.b16 %v577
          %v1399 = vunpack.c.h.b16 %v577
          %v1400 = vunpack.c.l.b16 %v578
          %v1401 = vunpack.c.l.b16 %v579
          %v1402 = vunpack.c.h.b16 %v579
          %v1403 = vunpack.c.l.b16 %v580
          %v1404 = vunpack.c.l.b16 %v581
          %v1405 = vunpack.c.h.b16 %v581
          %v1406 = vunpack.c.l.b16 %v582
          %v1407 = vunpack.c.l.b16 %v583
          %v1408 = vunpack.c.h.b16 %v583
          %v1409 = vunpack.c.l.b16 %v584
          %v1410 = vunpack.c.l.b16 %v585
          %v1411 = vunpack.c.h.b16 %v585
          %v1412 = vunpack.c.l.b16 %v586
          %v1413 = vpack.c.b16 %v1368, %v1365
          %v1414 = vpack.c.b16 %v1369, %v1366
          %v1415 = vpack.c.b16 %v1370, %v1367
          %v1416 = vpack.c.b16 %v1374, %v1371
          %v1417 = vpack.c.b16 %v1375, %v1372
          %v1418 = vpack.c.b16 %v1376, %v1373
          %v1419 = vpack.c.b16 %v1380, %v1377
          %v1420 = vpack.c.b16 %v1381, %v1378
          %v1421 = vpack.c.b16 %v1382, %v1379
          %v1422 = vpack.c.b16 %v1386, %v1383
          %v1423 = vpack.c.b16 %v1387, %v1384
          %v1424 = vpack.c.b16 %v1388, %v1385
          %v1425 = vpack.c.b16 %v1392, %v1389
          %v1426 = vpack.c.b16 %v1393, %v1390
          %v1427 = vpack.c.b16 %v1394, %v1391
          %v1428 = vpack.c.b16 %v1398, %v1395
          %v1429 = vpack.c.b16 %v1399, %v1396
          %v1430 = vpack.c.b16 %v1400, %v1397
          %v1431 = vpack.c.b16 %v1404, %v1401
          %v1432 = vpack.c.b16 %v1405, %v1402
          %v1433 = vpack.c.b16 %v1406, %v1403
          %v1434 = vpack.c.b16 %v1410, %v1407
          %v1435 = vpack.c.b16 %v1411, %v1408
          %v1436 = vpack.c.b16 %v1412, %v1409
          %1461 = vmatprep.subr.bf16.mxu0 %v1414
          %1462 = vmatpush1.bf16.msra.mxu0 %v1413
          %1463 = vmatprep.subr.bf16.mxu0 %v1417
          %1464 = vmatpush1.bf16.msra.mxu0 %v1416
          %1465 = vmatprep.subr.bf16.mxu0 %v1420
          %1466 = vmatpush1.bf16.msra.mxu0 %v1419
          %1467 = vmatprep.subr.bf16.mxu0 %v1423
          %1468 = vmatpush1.bf16.msra.mxu0 %v1422
          %1469 = vmatprep.subr.bf16.mxu0 %v1426
          %1470 = vmatpush1.bf16.msra.mxu0 %v1425
          %1471 = vmatprep.subr.bf16.mxu0 %v1429
          %1472 = vmatpush1.bf16.msra.mxu0 %v1428
          %1473 = vmatprep.subr.bf16.mxu0 %v1432
          %1474 = vmatpush1.bf16.msra.mxu0 %v1431
          %1475 = vmatprep.subr.bf16.mxu0 %v1435
          %1476 = vmatpush1.bf16.msra.mxu0 %v1434
          %1477 = vmatprep.subr.bf16.mxu0 0
          %1478 = vmatpush1.bf16.msra.mxu0 0
          %1479 = vmatprep.subr.bf16.mxu0 0
          %1480 = vmatpush1.bf16.msra.mxu0 0
          %1481 = vmatprep.subr.bf16.mxu0 0
          %1482 = vmatpush1.bf16.msra.mxu0 0
          %1483 = vmatprep.subr.bf16.mxu0 0
          %1484 = vmatpush1.bf16.msra.mxu0 0
          %1485 = vmatprep.subr.bf16.mxu0 0
          %1486 = vmatpush1.bf16.msra.mxu0 0
          %1487 = vmatprep.subr.bf16.mxu0 0
          %1488 = vmatpush1.bf16.msra.mxu0 0
          %1489 = vmatprep.subr.bf16.mxu0 0
          %1490 = vmatpush1.bf16.msra.mxu0 0
          %1491 = vmatprep.subr.bf16.mxu0 0
          %1492 = vmatpush1.bf16.msra.mxu0 0
          %1493 = vmatprep.mubr.bf16.mxu0 0
          %1494 = vmatmul.mubr.bf16.gmra.mrb[0].mxu0 %v1123
          %v1495 = vpop.f32.mrb[0].mxu0
          %v1496 = vadd.f32 0.0, %v1495
          %v1497 = vpop.f32.mrb[0].mxu0
          %v1498 = vadd.f32 0.0, %v1497
          %v1499 = vpop.f32.mrb[0].mxu0
          %v1500 = vpop.f32.mrb[0].mxu0
          %1501 = vdwg.mxu0
          %1502 = vmatprep.subr.bf16.mxu0 0
          %1503 = vmatpush1.bf16.msra.mxu0 %v1415
          %1504 = vmatprep.subr.bf16.mxu0 0
          %1505 = vmatpush1.bf16.msra.mxu0 %v1418
          %1506 = vmatprep.subr.bf16.mxu0 0
          %1507 = vmatpush1.bf16.msra.mxu0 %v1421
          %1508 = vmatprep.subr.bf16.mxu0 0
          %1509 = vmatpush1.bf16.msra.mxu0 %v1424
          %1510 = vmatprep.subr.bf16.mxu0 0
          %1511 = vmatpush1.bf16.msra.mxu0 %v1427
          %1512 = vmatprep.subr.bf16.mxu0 0
          %1513 = vmatpush1.bf16.msra.mxu0 %v1430
          %1514 = vmatprep.subr.bf16.mxu0 0
          %1515 = vmatpush1.bf16.msra.mxu0 %v1433
          %1516 = vmatprep.subr.bf16.mxu0 0
          %1517 = vmatpush1.bf16.msra.mxu0 %v1436
          %1518 = vmatprep.subr.bf16.mxu0 0
          %1519 = vmatpush1.bf16.msra.mxu0 0
          %1520 = vmatprep.subr.bf16.mxu0 0
          %1521 = vmatpush1.bf16.msra.mxu0 0
          %1522 = vmatprep.subr.bf16.mxu0 0
          %1523 = vmatpush1.bf16.msra.mxu0 0
          %1524 = vmatprep.subr.bf16.mxu0 0
          %1525 = vmatpush1.bf16.msra.mxu0 0
          %1526 = vmatprep.subr.bf16.mxu0 0
          %1527 = vmatpush1.bf16.msra.mxu0 0
          %1528 = vmatprep.subr.bf16.mxu0 0
          %1529 = vmatpush1.bf16.msra.mxu0 0
          %1530 = vmatprep.subr.bf16.mxu0 0
          %1531 = vmatpush1.bf16.msra.mxu0 0
          %1532 = vmatprep.subr.bf16.mxu0 0
          %1533 = vmatpush1.bf16.msra.mxu0 0
          %1534 = vmatprep.mubr.bf16.mxu0 0
          %1535 = vmatmul.mubr.bf16.gmra.mrb[0].mxu0 %v1123
          %v1536 = vpop.f32.mrb[0].mxu0
          %v1537 = vadd.f32 0.0, %v1536
          %v1538 = vpop.f32.mrb[0].mxu0
          %v1539 = vpop.f32.mrb[0].mxu0
          %v1540 = vpop.f32.mrb[0].mxu0
          %1541 = vdwg.mxu0
          %v1542 = vadd.f32 %v1287, %v1496
          %v1543 = vxor.u32 %v1542, 2147483648
          %v1544 = vmul.f32 %v1543, 1.442695
          %v1545 = vpow.pop %v1544
          %v1546 = vadd.f32 %v1545, 1.0
          %v1547 = vrcp.pop %v1546
          %v1548 = vmul.f32 1.0, %v1547
          %v1549 = vadd.f32 %v1289, %v1498
          %v1550 = vxor.u32 %v1549, 2147483648
          %v1551 = vmul.f32 %v1550, 1.442695
          %v1552 = vpow.pop %v1551
          %v1553 = vadd.f32 %v1552, 1.0
          %v1554 = vrcp.pop %v1553
          %v1555 = vmul.f32 1.0, %v1554
          %v1556 = vadd.f32 %v1537, %v643
          %v1557 = vmul.f32 %v1548, %v1556
          %v1558 = vadd.f32 %v1328, %v1557
          %v1559 = vtanh.pop %v1558
          %v1560 = vsub.f32 1.0, %v1555
          %v1561 = vmul.f32 %v1560, %v1559
          %v1562 = vmul.f32 %v1555, %v893
          %v1563 = vadd.f32 %v1561, %v1562
          %v1564 = vsel %vm894, %v1563, 0.0
          %1565 = vadd.xlane.f32.xlu0 %v1564
          %v1566 = vpop.xlane.xlu0 %1565
          %v1567 = vmul.f32 %v1566, 0.03125
          %v1568 = vmul.f32 %v1563, %v1563
          %v1569 = vsel %vm894, %v1568, 0.0
          %1570 = vadd.xlane.f32.xlu0 %v1569
          %v1571 = vpop.xlane.xlu0 %1570
          %v1572 = vmul.f32 %v1571, 0.03125
          %v1573 = vsub.f32 %v1563, %v1567
          %v1574 = vmul.f32 %v1567, %v1567
          %v1575 = vsub.f32 %v1572, %v1574
          %v1576 = vadd.f32 %v1575, 1e-05
          %v1577 = vrsqrt.pop %v1576
          %v1578 = vmul.f32 %v1573, %v1577
          %v1579 = vlaneseq
          %v1580 = vshrl.u32 %v1579, 7
          %v1581 = vsub.s32 0, %v1580
          %v1582 = vrot.slane %v465, %v1581
          %v1583 = vmul.f32 %v1578, %v1582
          %v1584 = vlaneseq
          %v1585 = vshrl.u32 %v1584, 7
          %v1586 = vsub.s32 0, %v1585
          %v1587 = vrot.slane %v466, %v1586
          %v1588 = vadd.f32 %v1583, %v1587
          %v1589 = vpack.c.bf16 %v1588, %v1588
          %v1606 = vunpack.c.l.b16 %v587
          %v1607 = vunpack.c.l.b16 %v588
          %v1608 = vunpack.c.l.b16 %v589
          %v1609 = vunpack.c.l.b16 %v590
          %v1610 = vunpack.c.l.b16 %v591
          %v1611 = vunpack.c.l.b16 %v592
          %v1612 = vunpack.c.l.b16 %v593
          %v1613 = vunpack.c.l.b16 %v594
          %v1614 = vunpack.c.l.b16 %v595
          %v1615 = vunpack.c.l.b16 %v596
          %v1616 = vunpack.c.l.b16 %v597
          %v1617 = vunpack.c.l.b16 %v598
          %v1618 = vunpack.c.l.b16 %v599
          %v1619 = vunpack.c.l.b16 %v600
          %v1620 = vunpack.c.l.b16 %v601
          %v1621 = vunpack.c.l.b16 %v602
          %v1622 = vpack.c.b16 %v1607, %v1606
          %v1623 = vpack.c.b16 %v1609, %v1608
          %v1624 = vpack.c.b16 %v1611, %v1610
          %v1625 = vpack.c.b16 %v1613, %v1612
          %v1626 = vpack.c.b16 %v1615, %v1614
          %v1627 = vpack.c.b16 %v1617, %v1616
          %v1628 = vpack.c.b16 %v1619, %v1618
          %v1629 = vpack.c.b16 %v1621, %v1620
          %1638 = vmatprep.subr.bf16.mxu0 0
          %1639 = vmatpush1.bf16.msra.mxu0 %v1622
          %1640 = vmatprep.subr.bf16.mxu0 0
          %1641 = vmatpush1.bf16.msra.mxu0 %v1623
          %1642 = vmatprep.subr.bf16.mxu0 0
          %1643 = vmatpush1.bf16.msra.mxu0 %v1624
          %1644 = vmatprep.subr.bf16.mxu0 0
          %1645 = vmatpush1.bf16.msra.mxu0 %v1625
          %1646 = vmatprep.subr.bf16.mxu0 0
          %1647 = vmatpush1.bf16.msra.mxu0 %v1626
          %1648 = vmatprep.subr.bf16.mxu0 0
          %1649 = vmatpush1.bf16.msra.mxu0 %v1627
          %1650 = vmatprep.subr.bf16.mxu0 0
          %1651 = vmatpush1.bf16.msra.mxu0 %v1628
          %1652 = vmatprep.subr.bf16.mxu0 0
          %1653 = vmatpush1.bf16.msra.mxu0 %v1629
          %1654 = vmatprep.subr.bf16.mxu0 0
          %1655 = vmatpush1.bf16.msra.mxu0 0
          %1656 = vmatprep.subr.bf16.mxu0 0
          %1657 = vmatpush1.bf16.msra.mxu0 0
          %1658 = vmatprep.subr.bf16.mxu0 0
          %1659 = vmatpush1.bf16.msra.mxu0 0
          %1660 = vmatprep.subr.bf16.mxu0 0
          %1661 = vmatpush1.bf16.msra.mxu0 0
          %1662 = vmatprep.subr.bf16.mxu0 0
          %1663 = vmatpush1.bf16.msra.mxu0 0
          %1664 = vmatprep.subr.bf16.mxu0 0
          %1665 = vmatpush1.bf16.msra.mxu0 0
          %1666 = vmatprep.subr.bf16.mxu0 0
          %1667 = vmatpush1.bf16.msra.mxu0 0
          %1668 = vmatprep.subr.bf16.mxu0 0
          %1669 = vmatpush1.bf16.msra.mxu0 0
          %1670 = vmatprep.mubr.bf16.mxu0 0
          %1671 = vmatmul.mubr.bf16.gmra.mrb[0].mxu0 %v1589
          %v1672 = vpop.f32.mrb[0].mxu0
          %v1673 = vadd.f32 %v649, %v1672
          %v1674 = vpop.f32.mrb[0].mxu0
          %v1675 = vpop.f32.mrb[0].mxu0
          %v1676 = vpop.f32.mrb[0].mxu0
          %1677 = vdwg.mxu0
          %v1678 = vmax.f32 %v1673, 0.0
          %v1679 = vpack.c.bf16 %v1678, %v1678
          %v1696 = vunpack.c.l.b16 %v603
          %v1697 = vunpack.c.l.b16 %v604
          %v1698 = vunpack.c.l.b16 %v605
          %v1699 = vunpack.c.l.b16 %v606
          %v1700 = vunpack.c.l.b16 %v607
          %v1701 = vunpack.c.l.b16 %v608
          %v1702 = vunpack.c.l.b16 %v609
          %v1703 = vunpack.c.l.b16 %v610
          %v1704 = vunpack.c.l.b16 %v611
          %v1705 = vunpack.c.l.b16 %v612
          %v1706 = vunpack.c.l.b16 %v613
          %v1707 = vunpack.c.l.b16 %v614
          %v1708 = vunpack.c.l.b16 %v615
          %v1709 = vunpack.c.l.b16 %v616
          %v1710 = vunpack.c.l.b16 %v617
          %v1711 = vunpack.c.l.b16 %v618
          %v1712 = vpack.c.b16 %v1697, %v1696
          %v1713 = vpack.c.b16 %v1699, %v1698
          %v1714 = vpack.c.b16 %v1701, %v1700
          %v1715 = vpack.c.b16 %v1703, %v1702
          %v1716 = vpack.c.b16 %v1705, %v1704
          %v1717 = vpack.c.b16 %v1707, %v1706
          %v1718 = vpack.c.b16 %v1709, %v1708
          %v1719 = vpack.c.b16 %v1711, %v1710
          %1728 = vmatprep.subr.bf16.mxu0 0
          %1729 = vmatpush1.bf16.msra.mxu0 %v1712
          %1730 = vmatprep.subr.bf16.mxu0 0
          %1731 = vmatpush1.bf16.msra.mxu0 %v1713
          %1732 = vmatprep.subr.bf16.mxu0 0
          %1733 = vmatpush1.bf16.msra.mxu0 %v1714
          %1734 = vmatprep.subr.bf16.mxu0 0
          %1735 = vmatpush1.bf16.msra.mxu0 %v1715
          %1736 = vmatprep.subr.bf16.mxu0 0
          %1737 = vmatpush1.bf16.msra.mxu0 %v1716
          %1738 = vmatprep.subr.bf16.mxu0 0
          %1739 = vmatpush1.bf16.msra.mxu0 %v1717
          %1740 = vmatprep.subr.bf16.mxu0 0
          %1741 = vmatpush1.bf16.msra.mxu0 %v1718
          %1742 = vmatprep.subr.bf16.mxu0 0
          %1743 = vmatpush1.bf16.msra.mxu0 %v1719
          %1744 = vmatprep.subr.bf16.mxu0 0
          %1745 = vmatpush1.bf16.msra.mxu0 0
          %1746 = vmatprep.subr.bf16.mxu0 0
          %1747 = vmatpush1.bf16.msra.mxu0 0
          %1748 = vmatprep.subr.bf16.mxu0 0
          %1749 = vmatpush1.bf16.msra.mxu0 0
          %1750 = vmatprep.subr.bf16.mxu0 0
          %1751 = vmatpush1.bf16.msra.mxu0 0
          %1752 = vmatprep.subr.bf16.mxu0 0
          %1753 = vmatpush1.bf16.msra.mxu0 0
          %1754 = vmatprep.subr.bf16.mxu0 0
          %1755 = vmatpush1.bf16.msra.mxu0 0
          %1756 = vmatprep.subr.bf16.mxu0 0
          %1757 = vmatpush1.bf16.msra.mxu0 0
          %1758 = vmatprep.subr.bf16.mxu0 0
          %1759 = vmatpush1.bf16.msra.mxu0 0
          %1760 = vmatprep.mubr.bf16.mxu0 0
          %1761 = vmatmul.mubr.bf16.gmra.mrb[0].mxu0 %v1679
          %v1762 = vpop.f32.mrb[0].mxu0
          %v1763 = vadd.f32 0.0, %v1762
          %v1764 = vpop.f32.mrb[0].mxu0
          %v1765 = vpop.f32.mrb[0].mxu0
          %v1766 = vpop.f32.mrb[0].mxu0
          %1767 = vdwg.mxu0
          %v1768 = vadd.f32 %v1563, %v1763
          %v1769 = vadd.f32 %v1768, %v654
        $region89: #{tpu_custom_call.1} parent=55 // loop_footer
          %s892 = sadd.s32 1, %s888
        $region90: #{tpu_custom_call.1} parent=55 // loop_footer_branch
          %887 = sbr.rel target = $region86
        $region91: #{tpu_custom_call.1} parent=55 // loop_exit
          _
        %1770 = vst [vmem:[%s459] sm:$0xf] %v893
        %s1771 = sand.u32 %s238, 1
        %s1772 = scalar_lea.sflag [#allocation4], %s1771
        %s1773 = sand.u32 %s238, 1
        %s1774 = smul.addr %s1773, 4
        %s1775 = scalar_lea.vmem [#allocation14], %s1774
        // Predicated region
        $region92: #{tpu_custom_call.1} parent=55 // pred_check
          %p1776 = pneg %p248
        $region93: #{tpu_custom_call.1} parent=55 // pred_check_branch
          %1778 = sbr.rel (%p1776) target = $region95
        $region94: #{tpu_custom_call.1} parent=55 // pred_region
          %s1780 = ssub.s32 64, 64
          %1781 = vsyncadd %s1772, %s1780
          %s1782 = smul.addr %s31, 64
          %s1783 = scalar_lea.hbm %s9, %s1782
          %s1785 = sshll.u32 %s1775, 4
          %s1786 = int_to_ptr.vmem [resolvable:$true] %s1785
          %1788 = dma.vmem_to_hbm [thread:$0]  %s1786, 64, %s1783, %s1772
        $region95: #{tpu_custom_call.1} parent=55 // pred_fallthru
          _
      $region56: #{tpu_custom_call.1} parent=5 // pred_fallthru
        _
      %p1789 = scmp.le.s32.totalorder 2, %s26
      // Predicated region
      $region96: #{tpu_custom_call.1} parent=5 // pred_check
        %p1790 = pneg %p1789
      $region97: #{tpu_custom_call.1} parent=5 // pred_check_branch
        %1792 = sbr.rel (%p1790) target = $region99
      $region98: #{tpu_custom_call.1} parent=5 // pred_region
        %s1793 = ssub.s32 %s26, 2
        // Predicated region
        $region100: #{tpu_custom_call.1} parent=98 // pred_check
          %p1794 = pneg %p254
        $region101: #{tpu_custom_call.1} parent=98 // pred_check_branch
          %1796 = sbr.rel (%p1794) target = $region103
        $region102: #{tpu_custom_call.1} parent=98 // pred_region
          %s1797 = sand.u32 %s239, 1
          %s1798 = scalar_lea.sflag [#allocation4], %s1797
          %s1799 = sand.u32 %s239, 1
          %s1800 = smul.addr %s1799, 4
          %s1801 = scalar_lea.vmem [#allocation14], %s1800
          %1802 = dma.done %s1798, 64
        $region103: #{tpu_custom_call.1} parent=98 // pred_fallthru
          _
      $region99: #{tpu_custom_call.1} parent=5 // pred_fallthru
        _
    $region6: #{tpu_custom_call.1} parent=1 // loop_footer
      %s30 = sadd.s32 1, %s26
    $region7: #{tpu_custom_call.1} parent=1 // loop_footer_branch
      %25 = sbr.rel target = $region3
    $region8: #{tpu_custom_call.1} parent=1 // loop_exit
      _
    %1803 = vsyncpa [#allocation3], 1
    %s1804 = scalar_lea.sflag [#allocation3], 1
    %1805 = vsyncpa %s1804, 1
    %1806 = vsyncpa [#allocation6], 1
    %s1807 = scalar_lea.sflag [#allocation6], 1
    %1808 = vsyncpa %s1807, 1
    %1809 = vsyncpa [#allocation9], 1
    %1810 = vsyncpa [#allocation12], 1
    %1811 = vsyncpa [#allocation4], 1
    %s1812 = scalar_lea.sflag [#allocation4], 1
    %1813 = vsyncpa %s1812, 1

</llo_original>
